<compile_context>
chip_gen: v7x
topology: tpu7x:2x2x1
jax: 0.10.0
libtpu: 0.0.40
codegen_flags: <defaults>
</compile_context>

<pallas_src>
import jax
import jax.numpy as jnp
from jax import lax
from jax.experimental import pallas as pl
from jax.experimental.pallas import tpu as pltpu

BN_EPS = 1e-5
LEAKY_SLOPE = 0.2
D1, D2 = 256, 128               # discriminator hidden widths

DEFAULT_BLOCK_ROWS = 4096       # batch-tile rows for the tiled (large-B) path
FUSED_MAX_ROWS = 8192           # bf16 h1+h2 scratch <= 6 MiB -> safe on v7x (64 MiB VMEM)
FUSED_BLOCK_ROWS = 1024         # batch tile inside the fused path
TILED_VMEM_BUDGET = 20 << 20    # per-stage pipelined-block budget (headroom in scoped VMEM)
VMEM_LIMIT_BYTES = 32 << 20     # raise v5e's 16 MiB default; equals v6e/v7x default


def _leaky_relu(x):
    return jnp.where(x > 0, x, LEAKY_SLOPE * x)


def _round_up(x, m):
    return ((x + m - 1) // m) * m


def _cdiv(a, b):
    return -(-a // b)


def _mask_rows(h, tile_idx, tb, n_valid):
    """Zero out padded rows so BN stats only use real rows."""
    row = tile_idx * tb + lax.broadcasted_iota(jnp.int32, (h.shape[0], 1), 0)
    return jnp.where(row < n_valid, h, 0.0)


def _bn_scale_shift(s_ref, q_ref, g_ref, be_ref, inv_n):
    """Fused BatchNorm affine from accumulated sum / sum-of-squares."""
    mu = s_ref[...] * inv_n
    var = jnp.maximum(q_ref[...] * inv_n - mu * mu, 0.0)  # clamp cancellation
    scale = g_ref[...] * lax.rsqrt(var + BN_EPS)
    shift = be_ref[...] - mu * scale
    return scale, shift


# ----------------------------------------------------------------------------
# Fused single-call path (whole pipeline, h1/h2 resident in VMEM scratch)
# ----------------------------------------------------------------------------

def _make_fused_kernel(tb, n_valid, needs_mask):
    inv_n = 1.0 / float(n_valid)

    def kernel(xa_ref, xp_ref, w1a_ref, w1p_ref, b1_ref,
               g1_ref, be1_ref, w2_ref, b2_ref,
               g2_ref, be2_ref, w3_ref, b3_ref,
               o_ref,
               h1_s, h2_s, s1, q1, s2, q2):
        p = pl.program_id(0)   # phase: 0 = layer1, 1 = BN1+layer2, 2 = BN2+head
        i = pl.program_id(1)   # batch tile

        @pl.when(p == 0)
        def _phase0():
            @pl.when(i == 0)
            def _():
                s1[...] = jnp.zeros_like(s1)
                q1[...] = jnp.zeros_like(q1)
            xa = xa_ref[...].astype(jnp.bfloat16)
            xp = xp_ref[...].astype(jnp.bfloat16)
            # concat([xa, xp]) @ W1  ==  xa @ W1[:emb] + xp @ W1[emb:]
            h = (jnp.dot(xa, w1a_ref[...], preferred_element_type=jnp.float32)
                 + jnp.dot(xp, w1p_ref[...], preferred_element_type=jnp.float32)
                 + b1_ref[...])
            h = _leaky_relu(h)
            h1_s[i] = h.astype(jnp.bfloat16)
            hs = _mask_rows(h, i, tb, n_valid) if needs_mask else h
            s1[...] += jnp.sum(hs, axis=0, keepdims=True)
            q1[...] += jnp.sum(hs * hs, axis=0, keepdims=True)

        @pl.when(p == 1)
        def _phase1():
            @pl.when(i == 0)
            def _():
                s2[...] = jnp.zeros_like(s2)
                q2[...] = jnp.zeros_like(q2)
            scale, shift = _bn_scale_shift(s1, q1, g1_ref, be1_ref, inv_n)
            hn = (h1_s[i] * scale + shift).astype(jnp.bfloat16)
            h = jnp.dot(hn, w2_ref[...],
                        preferred_element_type=jnp.float32) + b2_ref[...]
            h = _leaky_relu(h)
            h2_s[i] = h.astype(jnp.bfloat16)
            hs = _mask_rows(h, i, tb, n_valid) if needs_mask else h
            s2[...] += jnp.sum(hs, axis=0, keepdims=True)
            q2[...] += jnp.sum(hs * hs, axis=0, keepdims=True)

        @pl.when(p == 2)
        def _phase2():
            scale, shift = _bn_scale_shift(s2, q2, g2_ref, be2_ref, inv_n)
            w3 = w3_ref[...]                                   # (1, D2)
            w_eff = scale * w3                                 # fold BN into head
            c = jnp.sum(shift * w3, axis=-1, keepdims=True) + b3_ref[...]
            # N=1 matmul as VPU multiply + lane reduction
            logits = jnp.sum(h2_s[i] * w_eff, axis=-1, keepdims=True) + c  # (tb, 1)
            o_ref[...] = jax.nn.sigmoid(logits).T              # lane-dense (1, tb)

    return kernel


def _fused_call(xa, xp, p, *, tb, b_pad, nb, n_valid, needs_mask, emb_dim):
    def resident(shape):
        return pl.BlockSpec(shape, lambda ph, i: (0, 0))

    def tile_spec(feat):
        return pl.BlockSpec((tb, feat), lambda ph, i: (i, 0))

    return pl.pallas_call(
        _make_fused_kernel(tb, n_valid, needs_mask),
        grid=(3, nb),
        in_specs=[tile_spec(emb_dim), tile_spec(emb_dim),
                  resident((emb_dim, D1)), resident((emb_dim, D1)), resident((1, D1)),
                  resident((1, D1)), resident((1, D1)),
                  resident((D1, D2)), resident((1, D2)),
                  resident((1, D2)), resident((1, D2)),
                  resident((1, D2)), resident((1, 1))],
        out_specs=pl.BlockSpec((1, tb), lambda ph, i: (0, i)),
        out_shape=jax.ShapeDtypeStruct((1, b_pad), jnp.float32),
        scratch_shapes=[pltpu.VMEM((nb, tb, D1), jnp.bfloat16),
                        pltpu.VMEM((nb, tb, D2), jnp.bfloat16),
                        pltpu.VMEM((1, D1), jnp.float32),
                        pltpu.VMEM((1, D1), jnp.float32),
                        pltpu.VMEM((1, D2), jnp.float32),
                        pltpu.VMEM((1, D2), jnp.float32)],
        compiler_params=pltpu.CompilerParams(
            dimension_semantics=("arbitrary", "arbitrary"),
            vmem_limit_bytes=VMEM_LIMIT_BYTES),
    )(xa, xp, p["w1a"], p["w1p"], p["b1"],
      p["g1"], p["be1"], p["w2"], p["b2"],
      p["g2"], p["be2"], p["w3"], p["b3"])


# ----------------------------------------------------------------------------
# Tiled 3-call path (large batches): bf16 HBM intermediates + stat accumulators
# ----------------------------------------------------------------------------

def _make_stage1_kernel(tb, n_valid, needs_mask):
    """Linear(2*emb -> 256) (concat-free) + LeakyReLU; accumulate BN1 stats."""

    def kernel(xa_ref, xp_ref, w1a_ref, w1p_ref, b1_ref,
               h1_ref, sum1_ref, sq1_ref):
        i = pl.program_id(0)
        xa = xa_ref[...].astype(jnp.bfloat16)
        xp = xp_ref[...].astype(jnp.bfloat16)
        h = (jnp.dot(xa, w1a_ref[...], preferred_element_type=jnp.float32)
             + jnp.dot(xp, w1p_ref[...], preferred_element_type=jnp.float32)
             + b1_ref[...])
        h = _leaky_relu(h)
        h1_ref[...] = h.astype(jnp.bfloat16)          # bf16 intermediate store
        hs = _mask_rows(h, i, tb, n_valid) if needs_mask else h

        @pl.when(i == 0)
        def _():
            sum1_ref[...] = jnp.zeros_like(sum1_ref)
            sq1_ref[...] = jnp.zeros_like(sq1_ref)

        sum1_ref[...] += jnp.sum(hs, axis=0, keepdims=True)
        sq1_ref[...] += jnp.sum(hs * hs, axis=0, keepdims=True)

    return kernel


def _make_stage2_kernel(tb, n_valid, needs_mask):
    """BN1 (from stage-1 stats) + Linear(256 -> 128) + LeakyReLU; BN2 stats."""
    inv_n = 1.0 / float(n_valid)

    def kernel(h1_ref, sum1_ref, sq1_ref, g1_ref, be1_ref, w2_ref, b2_ref,
               h2_ref, sum2_ref, sq2_ref):
        i = pl.program_id(0)
        scale, shift = _bn_scale_shift(sum1_ref, sq1_ref, g1_ref, be1_ref, inv_n)
        hn = (h1_ref[...] * scale + shift).astype(jnp.bfloat16)
        h = jnp.dot(hn, w2_ref[...],
                    preferred_element_type=jnp.float32) + b2_ref[...]
        h = _leaky_relu(h)
        h2_ref[...] = h.astype(jnp.bfloat16)
        hs = _mask_rows(h, i, tb, n_valid) if needs_mask else h

        @pl.when(i == 0)
        def _():
            sum2_ref[...] = jnp.zeros_like(sum2_ref)
            sq2_ref[...] = jnp.zeros_like(sq2_ref)

        sum2_ref[...] += jnp.sum(hs, axis=0, keepdims=True)
        sq2_ref[...] += jnp.sum(hs * hs, axis=0, keepdims=True)

    return kernel


def _make_stage3_kernel(n_valid):
    """BN2 folded into Linear(128 -> 1) + Sigmoid; lane-dense (1, tb) output."""
    inv_n = 1.0 / float(n_valid)

    def kernel(h2_ref, sum2_ref, sq2_ref, g2_ref, be2_ref, w3_ref, b3_ref, o_ref):
        scale, shift = _bn_scale_shift(sum2_ref, sq2_ref, g2_ref, be2_ref, inv_n)
        w3 = w3_ref[...]
        w_eff = scale * w3
        c = jnp.sum(shift * w3, axis=-1, keepdims=True) + b3_ref[...]
        logits = jnp.sum(h2_ref[...] * w_eff, axis=-1, keepdims=True) + c   # (tb, 1)
        o_ref[...] = jax.nn.sigmoid(logits).T                               # (1, tb)

    return kernel


def _tiled_call(xa, xp, p, *, tb, b_pad, nb, n_valid, needs_mask, emb_dim):
    f32, bf16 = jnp.float32, jnp.bfloat16

    def tile_spec(feat):
        return pl.BlockSpec((tb, feat), lambda i: (i, 0))

    def resident(shape):
        return pl.BlockSpec(shape, lambda i: (0, 0))

    cp_arb = pltpu.CompilerParams(dimension_semantics=("arbitrary",),
                                  vmem_limit_bytes=VMEM_LIMIT_BYTES)
    cp_par = pltpu.CompilerParams(dimension_semantics=("parallel",),
                                  vmem_limit_bytes=VMEM_LIMIT_BYTES)

    # TODO(synk): on v7x megacore, per-core partial BN accumulators would let
    # stages 1-2 shard the batch axis across both TensorCores; the shared
    # accumulator keeps them on the single-core "arbitrary" path here.

    h1, s1, q1 = pl.pallas_call(
        _make_stage1_kernel(tb, n_valid, needs_mask),
        grid=(nb,),
        in_specs=[tile_spec(emb_dim), tile_spec(emb_dim),
                  resident((emb_dim, D1)), resident((emb_dim, D1)),
                  resident((1, D1))],
        out_specs=(tile_spec(D1), resident((1, D1)), resident((1, D1))),
        out_shape=(jax.ShapeDtypeStruct((b_pad, D1), bf16),
                   jax.ShapeDtypeStruct((1, D1), f32),
                   jax.ShapeDtypeStruct((1, D1), f32)),
        compiler_params=cp_arb,
    )(xa, xp, p["w1a"], p["w1p"], p["b1"])

    h2, s2, q2 = pl.pallas_call(
        _make_stage2_kernel(tb, n_valid, needs_mask),
        grid=(nb,),
        in_specs=[tile_spec(D1),
                  resident((1, D1)), resident((1, D1)),
                  resident((1, D1)), resident((1, D1)),
                  resident((D1, D2)), resident((1, D2))],
        out_specs=(tile_spec(D2), resident((1, D2)), resident((1, D2))),
        out_shape=(jax.ShapeDtypeStruct((b_pad, D2), bf16),
                   jax.ShapeDtypeStruct((1, D2), f32),
                   jax.ShapeDtypeStruct((1, D2), f32)),
        compiler_params=cp_arb,
    )(h1, s1, q1, p["g1"], p["be1"], p["w2"], p["b2"])

    out = pl.pallas_call(
        _make_stage3_kernel(n_valid),
        grid=(nb,),
        in_specs=[tile_spec(D2),
                  resident((1, D2)), resident((1, D2)),
                  resident((1, D2)), resident((1, D2)),
                  resident((1, D2)), resident((1, 1))],
        out_specs=pl.BlockSpec((1, tb), lambda i: (0, i)),
        out_shape=jax.ShapeDtypeStruct((1, b_pad), f32),
        compiler_params=cp_par,
    )(h2, s2, q2, p["g2"], p["be2"], p["w3"], p["b3"])
    return out


# ----------------------------------------------------------------------------
# Tiling selection
# ----------------------------------------------------------------------------

def _choose_tiling(B, block_rows):
    """Return (tile_rows, padded_batch, num_tiles).

    Single tile: tb multiple of 8. Multi tile: tb multiple of 128 so the
    lane-dense (1, tb) output block is layout-legal, tiles balanced so the last
    tile is not mostly padding."""
    block_rows = max(8, block_rows)
    if B <= block_rows:
        tb = _round_up(B, 8)
        return tb, tb, 1
    nb0 = _cdiv(B, block_rows)
    tb = _round_up(_cdiv(B, nb0), 128)
    nb = _cdiv(B, tb)
    return tb, nb * tb, nb


def _tiled_block_rows(emb_dim, block_rows):
    """Cap tile rows so double-buffered per-stage blocks fit the VMEM budget."""
    emb_lanes = _round_up(max(emb_dim, 1), 128)          # f32 inputs are lane-padded
    s1_per_row = 2 * (2 * emb_lanes * 4) + 2 * (D1 * 2)  # two f32 inputs + bf16 h1
    s2_per_row = 2 * (D1 * 2) + 2 * (D2 * 2)             # bf16 h1 in + bf16 h2 out
    per_row = max(s1_per_row, s2_per_row)
    cap = max(128, (TILED_VMEM_BUDGET // per_row) // 128 * 128)
    return min(block_rows, cap)


# ----------------------------------------------------------------------------
# Wrapper
# ----------------------------------------------------------------------------

def attacker_forward(emb_active, emb_passive, params, *,
                     block_rows=DEFAULT_BLOCK_ROWS, force_tiled=False):
    """Pallas-backed equivalent of EnhancedFeatureInferenceAttacker.forward."""
    assert emb_active.shape == emb_passive.shape
    B, emb_dim = emb_active.shape

    use_fused = (not force_tiled) and _round_up(B, 8) <= FUSED_MAX_ROWS
    if use_fused:
        tb, b_pad, nb = _choose_tiling(B, min(FUSED_BLOCK_ROWS, block_rows))
    else:
        tb, b_pad, nb = _choose_tiling(B, _tiled_block_rows(emb_dim, block_rows))
    needs_mask = b_pad != B

    xa = emb_active.astype(jnp.float32)
    xp = emb_passive.astype(jnp.float32)
    if needs_mask:
        xa = jnp.pad(xa, ((0, b_pad - B), (0, 0)))
        xp = jnp.pad(xp, ((0, b_pad - B), (0, 0)))

    call = _fused_call if use_fused else _tiled_call
    out = call(xa, xp, params, tb=tb, b_pad=b_pad, nb=nb,
               n_valid=B, needs_mask=needs_mask, emb_dim=emb_dim)
    return out[0, :B][:, None]


# ----------------------------------------------------------------------------
# Parameter setup (spectral norm is one-time glue in plain JAX)
# ----------------------------------------------------------------------------

def _spectral_normalize(w, key, n_iter=20):
    """w: [out, in] (PyTorch layout). Returns w / sigma_max(w)."""
    # TODO(synk): PyTorch spectral_norm does 1 power iteration per forward with
    # persistent u; here sigma is converged once at setup (setup-glue choice).
    out_dim, _ = w.shape
    u = jax.random.normal(key, (out_dim,), dtype=w.dtype)
    u = u / (jnp.linalg.norm(u) + 1e-12)
    v = None
    for _ in range(n_iter):
        v = w.T @ u
        v = v / (jnp.linalg.norm(v) + 1e-12)
        u = w @ v
        u = u / (jnp.linalg.norm(u) + 1e-12)
    sigma = u @ (w @ v)
    return w / sigma


def _init_linear(key, out_features, in_features):
    """PyTorch nn.Linear default init: U(-1/sqrt(fan_in), 1/sqrt(fan_in))."""
    kw, kb = jax.random.split(key)
    bound = 1.0 / jnp.sqrt(in_features)
    w = jax.random.uniform(kw, (out_features, in_features), jnp.float32, -bound, bound)
    b = jax.random.uniform(kb, (out_features,), jnp.float32, -bound, bound)
    return w, b


def make_params(emb_dim=32, seed=0):
    key = jax.random.PRNGKey(seed)
    k1, k2, k3, s1, s2, s3 = jax.random.split(key, 6)

    w1, b1 = _init_linear(k1, D1, emb_dim * 2)
    w2, b2 = _init_linear(k2, D2, D1)
    w3, b3 = _init_linear(k3, 1, D2)

    w1 = _spectral_normalize(w1, s1)
    w2 = _spectral_normalize(w2, s2)
    w3 = _spectral_normalize(w3, s3)

    w1t = w1.T  # [2*emb_dim, 256]
    return dict(
        # layer-1 weight split into active / passive halves (concat-free layer 1),
        # stored [in, out] and bf16 (MXU-native)
        w1a=w1t[:emb_dim].astype(jnp.bfloat16),
        w1p=w1t[emb_dim:].astype(jnp.bfloat16),
        b1=b1.reshape(1, -1),
        g1=jnp.ones((1, D1), jnp.float32), be1=jnp.zeros((1, D1), jnp.float32),
        w2=w2.T.astype(jnp.bfloat16), b2=b2.reshape(1, -1),
        g2=jnp.ones((1, D2), jnp.float32), be2=jnp.zeros((1, D2), jnp.float32),
        w3=w3.reshape(1, -1).astype(jnp.float32),   # [1, 128] row for VPU reduction
        b3=b3.reshape(1, 1),
        # f32 copies kept only for the pure-JAX references
        w1_f32=w1t, b1_f32=b1.reshape(1, -1),
        w2_f32=w2.T, b2_f32=b2.reshape(1, -1),
        w3_f32=w3.T, b3_f32=b3.reshape(1, 1),
    )


# ----------------------------------------------------------------------------
# References
# ----------------------------------------------------------------------------

def _reference_forward_f32(emb_active, emb_passive, p):
    """Pure f32 JAX reference with the module's exact training-mode BN form."""
    x = jnp.concatenate([emb_active, emb_passive], axis=1)
    h = x @ p["w1_f32"] + p["b1_f32"]
    h = jnp.where(h > 0, h, LEAKY_SLOPE * h)
    mu = h.mean(0, keepdims=True); var = ((h - mu) ** 2).mean(0, keepdims=True)
    h = (h - mu) / jnp.sqrt(var + BN_EPS) * p["g1"] + p["be1"]
    h = h @ p["w2_f32"] + p["b2_f32"]
    h = jnp.where(h > 0, h, LEAKY_SLOPE * h)
    mu = h.mean(0, keepdims=True); var = ((h - mu) ** 2).mean(0, keepdims=True)
    h = (h - mu) / jnp.sqrt(var + BN_EPS) * p["g2"] + p["be2"]
    return jax.nn.sigmoid(h @ p["w3_f32"] + p["b3_f32"])


def _reference_forward_matched(emb_active, emb_passive, p):
    """JAX reference matching the kernel's precision policy: bf16 dot inputs,
    bf16 h1/h2 storage, f32 stats from pre-store values, var = E[x^2]-mu^2
    (clamped), fused scale/shift, w3 folded into the BN2 affine."""
    bf = jnp.bfloat16
    n = emb_active.shape[0]

    h = (jnp.dot(emb_active.astype(bf), p["w1a"], preferred_element_type=jnp.float32)
         + jnp.dot(emb_passive.astype(bf), p["w1p"], preferred_element_type=jnp.float32)
         + p["b1"])
    h = jnp.where(h > 0, h, LEAKY_SLOPE * h)
    s = h.sum(0, keepdims=True); q = (h * h).sum(0, keepdims=True)
    h = h.astype(bf).astype(jnp.float32)                      # bf16 storage round trip
    mu = s / n; var = jnp.maximum(q / n - mu * mu, 0.0)
    scale = p["g1"] * lax.rsqrt(var + BN_EPS); shift = p["be1"] - mu * scale

    h = jnp.dot((h * scale + shift).astype(bf), p["w2"],
                preferred_element_type=jnp.float32) + p["b2"]
    h = jnp.where(h > 0, h, LEAKY_SLOPE * h)
    s = h.sum(0, keepdims=True); q = (h * h).sum(0, keepdims=True)
    h = h.astype(bf).astype(jnp.float32)
    mu = s / n; var = jnp.maximum(q / n - mu * mu, 0.0)
    scale = p["g2"] * lax.rsqrt(var + BN_EPS); shift = p["be2"] - mu * scale

    w_eff = scale * p["w3"]
    c = jnp.sum(shift * p["w3"], axis=-1, keepdims=True) + p["b3"]
    logits = jnp.sum(h * w_eff, axis=-1, keepdims=True) + c
    return jax.nn.sigmoid(logits)


# TODO(synk): reconstructor path (self.reconstruct / ResBlocks), training loop,
# logging and plotting are not part of forward() and are not implemented.

if __name__ == "__main__":
    EMB_DIM = 32
    params = make_params(emb_dim=EMB_DIM, seed=0)

    def run_case(name, B, **kw):
        key = jax.random.PRNGKey(0)
        ka, kp = jax.random.split(key)
        ea = jax.random.normal(ka, (B, EMB_DIM), jnp.float32)
        ep = jax.random.normal(kp, (B, EMB_DIM), jnp.float32)
        out = jax.block_until_ready(attacker_forward(ea, ep, params, **kw))
        assert out.shape == (B, 1), f"{name}: bad shape {out.shape}"
        ref_m = _reference_forward_matched(ea, ep, params)
        assert jnp.allclose(out, ref_m, atol=2e-3, rtol=2e-3), \
            f"{name}: mismatch vs precision-matched JAX reference"
        ref_f = _reference_forward_f32(ea, ep, params)
        assert jnp.allclose(out, ref_f, atol=5e-2, rtol=5e-2), \
            f"{name}: mismatch vs f32 JAX reference (beyond bf16 tolerance)"

    # fused VMEM-resident fast path, single tile
    run_case("fused_single_tile", 8)
    # fused fast path, multiple tiles + padded rows masked out of BN stats
    run_case("fused_multi_tile_masked", 1300)
    # tiled 3-call fallback (bf16 intermediates, lane-dense output), with padding
    run_case("tiled_path_masked", 300, force_tiled=True, block_rows=128)

    print("KERNEL_OK")
</pallas_src>

<mosaic_0001>
module attributes {stable_mosaic.version = 11 : i64} {
  func.func @kernel(%arg0: i32, %arg1: i32, %arg2: memref<8x32xf32, #tpu.memory_space<vmem>>, %arg3: memref<8x32xf32, #tpu.memory_space<vmem>>, %arg4: memref<32x256xbf16, #tpu.memory_space<vmem>>, %arg5: memref<32x256xbf16, #tpu.memory_space<vmem>>, %arg6: memref<1x256xf32, #tpu.memory_space<vmem>>, %arg7: memref<1x256xf32, #tpu.memory_space<vmem>>, %arg8: memref<1x256xf32, #tpu.memory_space<vmem>>, %arg9: memref<256x128xbf16, #tpu.memory_space<vmem>>, %arg10: memref<1x128xf32, #tpu.memory_space<vmem>>, %arg11: memref<1x128xf32, #tpu.memory_space<vmem>>, %arg12: memref<1x128xf32, #tpu.memory_space<vmem>>, %arg13: memref<1x128xf32, #tpu.memory_space<vmem>>, %arg14: memref<1x1xf32, #tpu.memory_space<vmem>>, %arg15: memref<1x8xf32, #tpu.memory_space<vmem>>, %arg16: memref<1x8x256xbf16, #tpu.memory_space<vmem>>, %arg17: memref<1x8x128xbf16, #tpu.memory_space<vmem>>, %arg18: memref<1x256xf32, #tpu.memory_space<vmem>>, %arg19: memref<1x256xf32, #tpu.memory_space<vmem>>, %arg20: memref<1x128xf32, #tpu.memory_space<vmem>>, %arg21: memref<1x128xf32, #tpu.memory_space<vmem>>) attributes {dimension_semantics = [#tpu.dimension_semantics<arbitrary>, #tpu.dimension_semantics<arbitrary>], iteration_bounds = array<i64: 3, 1>, scalar_prefetch = 0 : i64, scratch_operands = 6 : i64, tpu.core_type = #tpu.core_type<tc>, window_params = [{transform_indices = @transform_0, window_bounds = array<i64: 8, 32>}, {transform_indices = @transform_1, window_bounds = array<i64: 8, 32>}, {pipeline_mode = #tpu.pipeline_mode<synchronous>, transform_indices = @transform_2, window_bounds = array<i64: 32, 256>}, {pipeline_mode = #tpu.pipeline_mode<synchronous>, transform_indices = @transform_3, window_bounds = array<i64: 32, 256>}, {pipeline_mode = #tpu.pipeline_mode<synchronous>, transform_indices = @transform_4, window_bounds = array<i64: 1, 256>}, {pipeline_mode = #tpu.pipeline_mode<synchronous>, transform_indices = @transform_5, window_bounds = array<i64: 1, 256>}, {pipeline_mode = #tpu.pipeline_mode<synchronous>, transform_indices = @transform_6, window_bounds = array<i64: 1, 256>}, {pipeline_mode = #tpu.pipeline_mode<synchronous>, transform_indices = @transform_7, window_bounds = array<i64: 256, 128>}, {pipeline_mode = #tpu.pipeline_mode<synchronous>, transform_indices = @transform_8, window_bounds = array<i64: 1, 128>}, {pipeline_mode = #tpu.pipeline_mode<synchronous>, transform_indices = @transform_9, window_bounds = array<i64: 1, 128>}, {pipeline_mode = #tpu.pipeline_mode<synchronous>, transform_indices = @transform_10, window_bounds = array<i64: 1, 128>}, {pipeline_mode = #tpu.pipeline_mode<synchronous>, transform_indices = @transform_11, window_bounds = array<i64: 1, 128>}, {pipeline_mode = #tpu.pipeline_mode<synchronous>, transform_indices = @transform_12, window_bounds = array<i64: 1, 1>}, {transform_indices = @transform_13, window_bounds = array<i64: 1, 8>}]} {
    %c0_i32 = arith.constant 0 : i32
    %0 = arith.cmpi eq, %arg0, %c0_i32 : i32
    %1 = arith.extui %0 : i1 to i32
    %c0_i32_0 = arith.constant 0 : i32
    %2 = arith.cmpi ne, %1, %c0_i32_0 : i32
    scf.if %2 {
      %c0_i32_3 = arith.constant 0 : i32
      %9 = arith.cmpi eq, %arg1, %c0_i32_3 : i32
      %10 = arith.extui %9 : i1 to i32
      %c0_i32_4 = arith.constant 0 : i32
      %11 = arith.cmpi ne, %10, %c0_i32_4 : i32
      scf.if %11 {
        %cst_29 = arith.constant 0.000000e+00 : f32
        %45 = vector.broadcast %cst_29 : f32 to vector<1x256xf32>
        %c0_30 = arith.constant 0 : index
        %c0_31 = arith.constant 0 : index
        %46 = vector.load %arg18[%c0_30, %c0_31] : memref<1x256xf32, #tpu.memory_space<vmem>>, vector<1x256xf32>
        tpu.vector_store %arg18[%c0_30, %c0_31], %45 {strides = array<i32>} : memref<1x256xf32, #tpu.memory_space<vmem>>, vector<1x256xf32>,
        %cst_32 = arith.constant 0.000000e+00 : f32
        %47 = vector.broadcast %cst_32 : f32 to vector<1x256xf32>
        %c0_33 = arith.constant 0 : index
        %c0_34 = arith.constant 0 : index
        %48 = vector.load %arg19[%c0_33, %c0_34] : memref<1x256xf32, #tpu.memory_space<vmem>>, vector<1x256xf32>
        tpu.vector_store %arg19[%c0_33, %c0_34], %47 {strides = array<i32>} : memref<1x256xf32, #tpu.memory_space<vmem>>, vector<1x256xf32>,
      } else {
      }
      %c0 = arith.constant 0 : index
      %c0_5 = arith.constant 0 : index
      %12 = vector.load %arg2[%c0, %c0_5] : memref<8x32xf32, #tpu.memory_space<vmem>>, vector<8x32xf32>
      %13 = arith.truncf %12 : vector<8x32xf32> to vector<8x32xbf16>
      %c0_6 = arith.constant 0 : index
      %c0_7 = arith.constant 0 : index
      %14 = vector.load %arg3[%c0_6, %c0_7] : memref<8x32xf32, #tpu.memory_space<vmem>>, vector<8x32xf32>
      %15 = arith.truncf %14 : vector<8x32xf32> to vector<8x32xbf16>
      %c0_8 = arith.constant 0 : index
      %c0_9 = arith.constant 0 : index
      %16 = vector.load %arg4[%c0_8, %c0_9] : memref<32x256xbf16, #tpu.memory_space<vmem>>, vector<32x256xbf16>
      %cst = arith.constant dense<0.000000e+00> : vector<8x256xf32>
      %17 = tpu.matmul %13, %16, %cst {dimension_numbers = #tpu.dot_dimension_numbers<[1], [0], [0], [1], [0, 0, 1, 1], [], []>} : vector<8x32xbf16>, vector<32x256xbf16>, vector<8x256xf32> -> vector<8x256xf32>
      %c0_10 = arith.constant 0 : index
      %c0_11 = arith.constant 0 : index
      %18 = vector.load %arg5[%c0_10, %c0_11] : memref<32x256xbf16, #tpu.memory_space<vmem>>, vector<32x256xbf16>
      %cst_12 = arith.constant dense<0.000000e+00> : vector<8x256xf32>
      %19 = tpu.matmul %15, %18, %cst_12 {dimension_numbers = #tpu.dot_dimension_numbers<[1], [0], [0], [1], [0, 0, 1, 1], [], []>} : vector<8x32xbf16>, vector<32x256xbf16>, vector<8x256xf32> -> vector<8x256xf32>
      %20 = arith.addf %17, %19 : vector<8x256xf32>
      %c0_13 = arith.constant 0 : index
      %c0_14 = arith.constant 0 : index
      %21 = vector.load %arg6[%c0_13, %c0_14] : memref<1x256xf32, #tpu.memory_space<vmem>>, vector<1x256xf32>
      %22 = vector.broadcast %21 : vector<1x256xf32> to vector<8x256xf32>
      %23 = arith.addf %20, %22 : vector<8x256xf32>
      %cst_15 = arith.constant 0.000000e+00 : f32
      %24 = vector.broadcast %cst_15 : f32 to vector<8x256xf32>
      %25 = arith.cmpf ogt, %23, %24 : vector<8x256xf32>
      %cst_16 = arith.constant 2.000000e-01 : f32
      %26 = vector.broadcast %cst_16 : f32 to vector<8x256xf32>
      %27 = arith.mulf %26, %23 : vector<8x256xf32>
      %28 = arith.select %25, %23, %27 : vector<8x256xi1>, vector<8x256xf32>
      %29 = arith.truncf %28 : vector<8x256xf32> to vector<8x256xbf16>
      %30 = arith.index_cast %arg1 : i32 to index
      %c0_17 = arith.constant 0 : index
      %c0_18 = arith.constant 0 : index
      %31 = vector.load %arg16[%30, %c0_17, %c0_18] : memref<1x8x256xbf16, #tpu.memory_space<vmem>>, vector<1x8x256xbf16>
      %32 = vector.shape_cast %31 : vector<1x8x256xbf16> to vector<8x256xbf16>
      %33 = vector.shape_cast %29 : vector<8x256xbf16> to vector<1x8x256xbf16>
      tpu.vector_store %arg16[%30, %c0_17, %c0_18], %33 {strides = array<i32>} : memref<1x8x256xbf16, #tpu.memory_space<vmem>>, vector<1x8x256xbf16>,
      %c0_19 = arith.constant 0 : index
      %c0_20 = arith.constant 0 : index
      %34 = vector.load %arg18[%c0_19, %c0_20] : memref<1x256xf32, #tpu.memory_space<vmem>>, vector<1x256xf32>
      %cst_21 = arith.constant dense<0.000000e+00> : vector<256xf32>
      %35 = vector.multi_reduction <add>, %28, %cst_21 [0] : vector<8x256xf32> to vector<256xf32>
      %36 = vector.shape_cast %35 : vector<256xf32> to vector<1x256xf32>
      %37 = arith.addf %34, %36 : vector<1x256xf32>
      %c0_22 = arith.constant 0 : index
      %c0_23 = arith.constant 0 : index
      %38 = vector.load %arg18[%c0_22, %c0_23] : memref<1x256xf32, #tpu.memory_space<vmem>>, vector<1x256xf32>
      tpu.vector_store %arg18[%c0_22, %c0_23], %37 {strides = array<i32>} : memref<1x256xf32, #tpu.memory_space<vmem>>, vector<1x256xf32>,
      %c0_24 = arith.constant 0 : index
      %c0_25 = arith.constant 0 : index
      %39 = vector.load %arg19[%c0_24, %c0_25] : memref<1x256xf32, #tpu.memory_space<vmem>>, vector<1x256xf32>
      %40 = arith.mulf %28, %28 : vector<8x256xf32>
      %cst_26 = arith.constant dense<0.000000e+00> : vector<256xf32>
      %41 = vector.multi_reduction <add>, %40, %cst_26 [0] : vector<8x256xf32> to vector<256xf32>
      %42 = vector.shape_cast %41 : vector<256xf32> to vector<1x256xf32>
      %43 = arith.addf %39, %42 : vector<1x256xf32>
      %c0_27 = arith.constant 0 : index
      %c0_28 = arith.constant 0 : index
      %44 = vector.load %arg19[%c0_27, %c0_28] : memref<1x256xf32, #tpu.memory_space<vmem>>, vector<1x256xf32>
      tpu.vector_store %arg19[%c0_27, %c0_28], %43 {strides = array<i32>} : memref<1x256xf32, #tpu.memory_space<vmem>>, vector<1x256xf32>,
    } else {
    }
    %c1_i32 = arith.constant 1 : i32
    %3 = arith.cmpi eq, %arg0, %c1_i32 : i32
    %4 = arith.extui %3 : i1 to i32
    %c0_i32_1 = arith.constant 0 : i32
    %5 = arith.cmpi ne, %4, %c0_i32_1 : i32
    scf.if %5 {
      %c0_i32_3 = arith.constant 0 : i32
      %9 = arith.cmpi eq, %arg1, %c0_i32_3 : i32
      %10 = arith.extui %9 : i1 to i32
      %c0_i32_4 = arith.constant 0 : i32
      %11 = arith.cmpi ne, %10, %c0_i32_4 : i32
      scf.if %11 {
        %cst_36 = arith.constant 0.000000e+00 : f32
        %65 = vector.broadcast %cst_36 : f32 to vector<1x128xf32>
        %c0_37 = arith.constant 0 : index
        %c0_38 = arith.constant 0 : index
        %66 = vector.load %arg20[%c0_37, %c0_38] : memref<1x128xf32, #tpu.memory_space<vmem>>, vector<1x128xf32>
        tpu.vector_store %arg20[%c0_37, %c0_38], %65 {strides = array<i32>} : memref<1x128xf32, #tpu.memory_space<vmem>>, vector<1x128xf32>,
        %cst_39 = arith.constant 0.000000e+00 : f32
        %67 = vector.broadcast %cst_39 : f32 to vector<1x128xf32>
        %c0_40 = arith.constant 0 : index
        %c0_41 = arith.constant 0 : index
        %68 = vector.load %arg21[%c0_40, %c0_41] : memref<1x128xf32, #tpu.memory_space<vmem>>, vector<1x128xf32>
        tpu.vector_store %arg21[%c0_40, %c0_41], %67 {strides = array<i32>} : memref<1x128xf32, #tpu.memory_space<vmem>>, vector<1x128xf32>,
      } else {
      }
      %c0 = arith.constant 0 : index
      %c0_5 = arith.constant 0 : index
      %12 = vector.load %arg18[%c0, %c0_5] : memref<1x256xf32, #tpu.memory_space<vmem>>, vector<1x256xf32>
      %cst = arith.constant 1.250000e-01 : f32
      %13 = vector.broadcast %cst : f32 to vector<1x256xf32>
      %14 = arith.mulf %12, %13 : vector<1x256xf32>
      %c0_6 = arith.constant 0 : index
      %c0_7 = arith.constant 0 : index
      %15 = vector.load %arg19[%c0_6, %c0_7] : memref<1x256xf32, #tpu.memory_space<vmem>>, vector<1x256xf32>
      %cst_8 = arith.constant 1.250000e-01 : f32
      %16 = vector.broadcast %cst_8 : f32 to vector<1x256xf32>
      %17 = arith.mulf %15, %16 : vector<1x256xf32>
      %18 = arith.mulf %14, %14 : vector<1x256xf32>
      %19 = arith.subf %17, %18 : vector<1x256xf32>
      %cst_9 = arith.constant 0.000000e+00 : f32
      %20 = vector.broadcast %cst_9 : f32 to vector<1x256xf32>
      %21 = arith.maximumf %19, %20 : vector<1x256xf32>
      %c0_10 = arith.constant 0 : index
      %c0_11 = arith.constant 0 : index
      %22 = vector.load %arg7[%c0_10, %c0_11] : memref<1x256xf32, #tpu.memory_space<vmem>>, vector<1x256xf32>
      %cst_12 = arith.constant 9.99999974E-6 : f32
      %23 = vector.broadcast %cst_12 : f32 to vector<1x256xf32>
      %24 = arith.addf %21, %23 : vector<1x256xf32>
      %25 = math.rsqrt %24 : vector<1x256xf32>
      %26 = arith.mulf %22, %25 : vector<1x256xf32>
      %c0_13 = arith.constant 0 : index
      %c0_14 = arith.constant 0 : index
      %27 = vector.load %arg8[%c0_13, %c0_14] : memref<1x256xf32, #tpu.memory_space<vmem>>, vector<1x256xf32>
      %28 = arith.mulf %14, %26 : vector<1x256xf32>
      %29 = arith.subf %27, %28 : vector<1x256xf32>
      %30 = arith.index_cast %arg1 : i32 to index
      %c0_15 = arith.constant 0 : index
      %c0_16 = arith.constant 0 : index
      %31 = vector.load %arg16[%30, %c0_15, %c0_16] : memref<1x8x256xbf16, #tpu.memory_space<vmem>>, vector<1x8x256xbf16>
      %32 = vector.shape_cast %31 : vector<1x8x256xbf16> to vector<8x256xbf16>
      %33 = arith.extf %32 : vector<8x256xbf16> to vector<8x256xf32>
      %34 = vector.broadcast %26 : vector<1x256xf32> to vector<8x256xf32>
      %35 = arith.mulf %33, %34 : vector<8x256xf32>
      %36 = vector.broadcast %29 : vector<1x256xf32> to vector<8x256xf32>
      %37 = arith.addf %35, %36 : vector<8x256xf32>
      %38 = arith.truncf %37 : vector<8x256xf32> to vector<8x256xbf16>
      %c0_17 = arith.constant 0 : index
      %c0_18 = arith.constant 0 : index
      %39 = vector.load %arg9[%c0_17, %c0_18] : memref<256x128xbf16, #tpu.memory_space<vmem>>, vector<256x128xbf16>
      %cst_19 = arith.constant dense<0.000000e+00> : vector<8x128xf32>
      %40 = tpu.matmul %38, %39, %cst_19 {dimension_numbers = #tpu.dot_dimension_numbers<[1], [0], [0], [1], [0, 0, 1, 1], [], []>} : vector<8x256xbf16>, vector<256x128xbf16>, vector<8x128xf32> -> vector<8x128xf32>
      %c0_20 = arith.constant 0 : index
      %c0_21 = arith.constant 0 : index
      %41 = vector.load %arg10[%c0_20, %c0_21] : memref<1x128xf32, #tpu.memory_space<vmem>>, vector<1x128xf32>
      %42 = vector.broadcast %41 : vector<1x128xf32> to vector<8x128xf32>
      %43 = arith.addf %40, %42 : vector<8x128xf32>
      %cst_22 = arith.constant 0.000000e+00 : f32
      %44 = vector.broadcast %cst_22 : f32 to vector<8x128xf32>
      %45 = arith.cmpf ogt, %43, %44 : vector<8x128xf32>
      %cst_23 = arith.constant 2.000000e-01 : f32
      %46 = vector.broadcast %cst_23 : f32 to vector<8x128xf32>
      %47 = arith.mulf %46, %43 : vector<8x128xf32>
      %48 = arith.select %45, %43, %47 : vector<8x128xi1>, vector<8x128xf32>
      %49 = arith.truncf %48 : vector<8x128xf32> to vector<8x128xbf16>
      %50 = arith.index_cast %arg1 : i32 to index
      %c0_24 = arith.constant 0 : index
      %c0_25 = arith.constant 0 : index
      %51 = vector.load %arg17[%50, %c0_24, %c0_25] : memref<1x8x128xbf16, #tpu.memory_space<vmem>>, vector<1x8x128xbf16>
      %52 = vector.shape_cast %51 : vector<1x8x128xbf16> to vector<8x128xbf16>
      %53 = vector.shape_cast %49 : vector<8x128xbf16> to vector<1x8x128xbf16>
      tpu.vector_store %arg17[%50, %c0_24, %c0_25], %53 {strides = array<i32>} : memref<1x8x128xbf16, #tpu.memory_space<vmem>>, vector<1x8x128xbf16>,
      %c0_26 = arith.constant 0 : index
      %c0_27 = arith.constant 0 : index
      %54 = vector.load %arg20[%c0_26, %c0_27] : memref<1x128xf32, #tpu.memory_space<vmem>>, vector<1x128xf32>
      %cst_28 = arith.constant dense<0.000000e+00> : vector<128xf32>
      %55 = vector.multi_reduction <add>, %48, %cst_28 [0] : vector<8x128xf32> to vector<128xf32>
      %56 = vector.shape_cast %55 : vector<128xf32> to vector<1x128xf32>
      %57 = arith.addf %54, %56 : vector<1x128xf32>
      %c0_29 = arith.constant 0 : index
      %c0_30 = arith.constant 0 : index
      %58 = vector.load %arg20[%c0_29, %c0_30] : memref<1x128xf32, #tpu.memory_space<vmem>>, vector<1x128xf32>
      tpu.vector_store %arg20[%c0_29, %c0_30], %57 {strides = array<i32>} : memref<1x128xf32, #tpu.memory_space<vmem>>, vector<1x128xf32>,
      %c0_31 = arith.constant 0 : index
      %c0_32 = arith.constant 0 : index
      %59 = vector.load %arg21[%c0_31, %c0_32] : memref<1x128xf32, #tpu.memory_space<vmem>>, vector<1x128xf32>
      %60 = arith.mulf %48, %48 : vector<8x128xf32>
      %cst_33 = arith.constant dense<0.000000e+00> : vector<128xf32>
      %61 = vector.multi_reduction <add>, %60, %cst_33 [0] : vector<8x128xf32> to vector<128xf32>
      %62 = vector.shape_cast %61 : vector<128xf32> to vector<1x128xf32>
      %63 = arith.addf %59, %62 : vector<1x128xf32>
      %c0_34 = arith.constant 0 : index
      %c0_35 = arith.constant 0 : index
      %64 = vector.load %arg21[%c0_34, %c0_35] : memref<1x128xf32, #tpu.memory_space<vmem>>, vector<1x128xf32>
      tpu.vector_store %arg21[%c0_34, %c0_35], %63 {strides = array<i32>} : memref<1x128xf32, #tpu.memory_space<vmem>>, vector<1x128xf32>,
    } else {
    }
    %c2_i32 = arith.constant 2 : i32
    %6 = arith.cmpi eq, %arg0, %c2_i32 : i32
    %7 = arith.extui %6 : i1 to i32
    %c0_i32_2 = arith.constant 0 : i32
    %8 = arith.cmpi ne, %7, %c0_i32_2 : i32
    scf.if %8 {
      %c0 = arith.constant 0 : index
      %c0_3 = arith.constant 0 : index
      %9 = vector.load %arg20[%c0, %c0_3] : memref<1x128xf32, #tpu.memory_space<vmem>>, vector<1x128xf32>
      %cst = arith.constant 1.250000e-01 : f32
      %10 = vector.broadcast %cst : f32 to vector<1x128xf32>
      %11 = arith.mulf %9, %10 : vector<1x128xf32>
      %c0_4 = arith.constant 0 : index
      %c0_5 = arith.constant 0 : index
      %12 = vector.load %arg21[%c0_4, %c0_5] : memref<1x128xf32, #tpu.memory_space<vmem>>, vector<1x128xf32>
      %cst_6 = arith.constant 1.250000e-01 : f32
      %13 = vector.broadcast %cst_6 : f32 to vector<1x128xf32>
      %14 = arith.mulf %12, %13 : vector<1x128xf32>
      %15 = arith.mulf %11, %11 : vector<1x128xf32>
      %16 = arith.subf %14, %15 : vector<1x128xf32>
      %cst_7 = arith.constant 0.000000e+00 : f32
      %17 = vector.broadcast %cst_7 : f32 to vector<1x128xf32>
      %18 = arith.maximumf %16, %17 : vector<1x128xf32>
      %c0_8 = arith.constant 0 : index
      %c0_9 = arith.constant 0 : index
      %19 = vector.load %arg11[%c0_8, %c0_9] : memref<1x128xf32, #tpu.memory_space<vmem>>, vector<1x128xf32>
      %cst_10 = arith.constant 9.99999974E-6 : f32
      %20 = vector.broadcast %cst_10 : f32 to vector<1x128xf32>
      %21 = arith.addf %18, %20 : vector<1x128xf32>
      %22 = math.rsqrt %21 : vector<1x128xf32>
      %23 = arith.mulf %19, %22 : vector<1x128xf32>
      %c0_11 = arith.constant 0 : index
      %c0_12 = arith.constant 0 : index
      %24 = vector.load %arg12[%c0_11, %c0_12] : memref<1x128xf32, #tpu.memory_space<vmem>>, vector<1x128xf32>
      %25 = arith.mulf %11, %23 : vector<1x128xf32>
      %26 = arith.subf %24, %25 : vector<1x128xf32>
      %c0_13 = arith.constant 0 : index
      %c0_14 = arith.constant 0 : index
      %27 = vector.load %arg13[%c0_13, %c0_14] : memref<1x128xf32, #tpu.memory_space<vmem>>, vector<1x128xf32>
      %28 = arith.mulf %23, %27 : vector<1x128xf32>
      %29 = arith.mulf %26, %27 : vector<1x128xf32>
      %cst_15 = arith.constant dense<0.000000e+00> : vector<1xf32>
      %30 = vector.multi_reduction <add>, %29, %cst_15 [1] : vector<1x128xf32> to vector<1xf32>
      %31 = vector.shape_cast %30 : vector<1xf32> to vector<1x1xf32>
      %c0_16 = arith.constant 0 : index
      %c0_17 = arith.constant 0 : index
      %32 = vector.load %arg14[%c0_16, %c0_17] : memref<1x1xf32, #tpu.memory_space<vmem>>, vector<1x1xf32>
      %33 = arith.addf %31, %32 : vector<1x1xf32>
      %34 = arith.index_cast %arg1 : i32 to index
      %c0_18 = arith.constant 0 : index
      %c0_19 = arith.constant 0 : index
      %35 = vector.load %arg17[%34, %c0_18, %c0_19] : memref<1x8x128xbf16, #tpu.memory_space<vmem>>, vector<1x8x128xbf16>
      %36 = vector.shape_cast %35 : vector<1x8x128xbf16> to vector<8x128xbf16>
      %37 = arith.extf %36 : vector<8x128xbf16> to vector<8x128xf32>
      %38 = vector.broadcast %28 : vector<1x128xf32> to vector<8x128xf32>
      %39 = arith.mulf %37, %38 : vector<8x128xf32>
      %cst_20 = arith.constant dense<0.000000e+00> : vector<8xf32>
      %40 = vector.multi_reduction <add>, %39, %cst_20 [1] : vector<8x128xf32> to vector<8xf32>
      %41 = vector.shape_cast %40 : vector<8xf32> to vector<8x1xf32>
      %42 = vector.broadcast %33 : vector<1x1xf32> to vector<8x1xf32>
      %43 = arith.addf %41, %42 : vector<8x1xf32>
      %44 = arith.negf %43 : vector<8x1xf32>
      %45 = math.exp %44 : vector<8x1xf32>
      %cst_21 = arith.constant 1.000000e+00 : f32
      %46 = vector.broadcast %cst_21 : f32 to vector<8x1xf32>
      %47 = arith.addf %46, %45 : vector<8x1xf32>
      %48 = arith.divf %46, %47 : vector<8x1xf32>
      %49 = tpu.transpose %48, [1, 0] : vector<8x1xf32> -> vector<1x8xf32>
      %c0_22 = arith.constant 0 : index
      %c0_23 = arith.constant 0 : index
      %50 = vector.load %arg15[%c0_22, %c0_23] : memref<1x8xf32, #tpu.memory_space<vmem>>, vector<1x8xf32>
      tpu.vector_store %arg15[%c0_22, %c0_23], %49 {strides = array<i32>} : memref<1x8xf32, #tpu.memory_space<vmem>>, vector<1x8xf32>,
    } else {
    }
    return
  }
  func.func @transform_0(%arg0: i32, %arg1: i32) -> (i32, i32) {
    %c0_i32 = arith.constant 0 : i32
    %c0_i32_0 = arith.constant 0 : i32
    return %arg1, %c0_i32 : i32, i32
  }
  func.func @transform_1(%arg0: i32, %arg1: i32) -> (i32, i32) {
    %c0_i32 = arith.constant 0 : i32
    %c0_i32_0 = arith.constant 0 : i32
    return %arg1, %c0_i32 : i32, i32
  }
  func.func @transform_2(%arg0: i32, %arg1: i32) -> (i32, i32) {
    %c0_i32 = arith.constant 0 : i32
    %c0_i32_0 = arith.constant 0 : i32
    %c0_i32_1 = arith.constant 0 : i32
    return %c0_i32, %c0_i32_0 : i32, i32
  }
  func.func @transform_3(%arg0: i32, %arg1: i32) -> (i32, i32) {
    %c0_i32 = arith.constant 0 : i32
    %c0_i32_0 = arith.constant 0 : i32
    %c0_i32_1 = arith.constant 0 : i32
    return %c0_i32, %c0_i32_0 : i32, i32
  }
  func.func @transform_4(%arg0: i32, %arg1: i32) -> (i32, i32) {
    %c0_i32 = arith.constant 0 : i32
    %c0_i32_0 = arith.constant 0 : i32
    %c0_i32_1 = arith.constant 0 : i32
    return %c0_i32, %c0_i32_0 : i32, i32
  }
  func.func @transform_5(%arg0: i32, %arg1: i32) -> (i32, i32) {
    %c0_i32 = arith.constant 0 : i32
    %c0_i32_0 = arith.constant 0 : i32
    %c0_i32_1 = arith.constant 0 : i32
    return %c0_i32, %c0_i32_0 : i32, i32
  }
  func.func @transform_6(%arg0: i32, %arg1: i32) -> (i32, i32) {
    %c0_i32 = arith.constant 0 : i32
    %c0_i32_0 = arith.constant 0 : i32
    %c0_i32_1 = arith.constant 0 : i32
    return %c0_i32, %c0_i32_0 : i32, i32
  }
  func.func @transform_7(%arg0: i32, %arg1: i32) -> (i32, i32) {
    %c0_i32 = arith.constant 0 : i32
    %c0_i32_0 = arith.constant 0 : i32
    %c0_i32_1 = arith.constant 0 : i32
    return %c0_i32, %c0_i32_0 : i32, i32
  }
  func.func @transform_8(%arg0: i32, %arg1: i32) -> (i32, i32) {
    %c0_i32 = arith.constant 0 : i32
    %c0_i32_0 = arith.constant 0 : i32
    %c0_i32_1 = arith.constant 0 : i32
    return %c0_i32, %c0_i32_0 : i32, i32
  }
  func.func @transform_9(%arg0: i32, %arg1: i32) -> (i32, i32) {
    %c0_i32 = arith.constant 0 : i32
    %c0_i32_0 = arith.constant 0 : i32
    %c0_i32_1 = arith.constant 0 : i32
    return %c0_i32, %c0_i32_0 : i32, i32
  }
  func.func @transform_10(%arg0: i32, %arg1: i32) -> (i32, i32) {
    %c0_i32 = arith.constant 0 : i32
    %c0_i32_0 = arith.constant 0 : i32
    %c0_i32_1 = arith.constant 0 : i32
    return %c0_i32, %c0_i32_0 : i32, i32
  }
  func.func @transform_11(%arg0: i32, %arg1: i32) -> (i32, i32) {
    %c0_i32 = arith.constant 0 : i32
    %c0_i32_0 = arith.constant 0 : i32
    %c0_i32_1 = arith.constant 0 : i32
    return %c0_i32, %c0_i32_0 : i32, i32
  }
  func.func @transform_12(%arg0: i32, %arg1: i32) -> (i32, i32) {
    %c0_i32 = arith.constant 0 : i32
    %c0_i32_0 = arith.constant 0 : i32
    %c0_i32_1 = arith.constant 0 : i32
    return %c0_i32, %c0_i32_0 : i32, i32
  }
  func.func @transform_13(%arg0: i32, %arg1: i32) -> (i32, i32) {
    %c0_i32 = arith.constant 0 : i32
    %c0_i32_0 = arith.constant 0 : i32
    return %c0_i32, %arg1 : i32, i32
  }
}

</mosaic_0001>

<llo_original>
// kernel: tpu_custom_call.1
$region0: #{tpu_custom_call.1}
  #allocation0 [shape = 'u32[]', space=smem, size = 0x4, offset = 0x4, fixed_abs, tag = 'smem constant byte address 0x4 - core index']
  #allocation1 [shape = 'u32[144,128]{1,0:T(1,128)}', space=vmem, size = 0x12000, scoped, tag = 'internal scratch']
  #allocation2 [shape = 'bf16[1,8,256]{2,1,0:T(8,128)(2,1)}', space=vmem, size = 0x1000, scoped, tag = 'scratch operand']
  #allocation3 [shape = 'bf16[1,8,128]{2,1,0:T(8,128)(2,1)}', space=vmem, size = 0x800, scoped, tag = 'scratch operand']
  #allocation4 [shape = 'f32[1,256]{1,0:T(1,128)}', space=vmem, size = 0x400, scoped, tag = 'scratch operand']
  #allocation5 [shape = 'f32[1,256]{1,0:T(1,128)}', space=vmem, size = 0x400, scoped, tag = 'scratch operand']
  #allocation6 [shape = 'f32[1,128]{1,0:T(1,128)}', space=vmem, size = 0x200, scoped, tag = 'scratch operand']
  #allocation7 [shape = 'f32[1,128]{1,0:T(1,128)}', space=vmem, size = 0x200, scoped, tag = 'scratch operand']
  #allocation8 [shape = 'f32[1,1]{1,0:T(1,128)S(1)}', space=vmem, size = 0x200, scoped, tag = 'scoped memory for tpu_custom_call.1']
  %s0 = inlined_call_operand.hbm [shape: f32[8,32], index: 0, kind: input, shape index: {}]
  %s1 = inlined_call_operand.hbm [shape: f32[8,32], index: 1, kind: input, shape index: {}]
  %s2 = inlined_call_operand.hbm [shape: bf16[32,256], index: 2, kind: input, shape index: {}]
  %s3 = inlined_call_operand.hbm [shape: bf16[32,256], index: 3, kind: input, shape index: {}]
  %s4 = inlined_call_operand.vmem [shape: f32[1,256], index: 4, kind: input, shape index: {}]
  %s5 = inlined_call_operand.vmem [shape: f32[1,256], index: 5, kind: input, shape index: {}]
  %s6 = inlined_call_operand.vmem [shape: f32[1,256], index: 6, kind: input, shape index: {}]
  %s7 = inlined_call_operand.hbm [shape: bf16[256,128], index: 7, kind: input, shape index: {}]
  %s8 = inlined_call_operand.vmem [shape: f32[1,128], index: 8, kind: input, shape index: {}]
  %s9 = inlined_call_operand.vmem [shape: f32[1,128], index: 9, kind: input, shape index: {}]
  %s10 = inlined_call_operand.vmem [shape: f32[1,128], index: 10, kind: input, shape index: {}]
  %s11 = inlined_call_operand.vmem [shape: f32[1,128], index: 11, kind: input, shape index: {}]
  %s12 = inlined_call_operand.<no memory space> [shape: f32[1,1], index: 12, kind: input, shape index: {}]
  %s13 = inlined_call_operand.hbm [shape: f32[1,8], index: 13, kind: output, shape index: {}]
  %s14 = sld [smem:[#allocation0]]
  $region125: #{tpu_custom_call.1} parent=0
    _
  %s16 = ssub.s32 1, %s14
  %s17 = scalar_select 0, %s16, %s14
  %v18 = vstv %s12
  %19 = vst [vmem:[#allocation8] sm:$0x1] %v18
  $region1: #{tpu_custom_call.1} parent=0
    #allocation9 [shape = 'u8[4096]{0}', space=vmem, size = 0x1000, scoped, tag = 'input window, operand 0, single buffered']
    #allocation10 [shape = 's32[2]{0}', space=sflag, size = 0x8, scoped, tag = 'scoped memory for tpu_custom_call.1']
    #allocation11 [shape = 's32[2]{0}', space=sflag, size = 0x8, scoped, tag = 'scoped memory for tpu_custom_call.1']
    #allocation12 [shape = 'u8[4096]{0}', space=vmem, size = 0x1000, scoped, tag = 'input window, operand 1, single buffered']
    #allocation13 [shape = 's32[1]{0}', space=sflag, size = 0x4, scoped, tag = 'scoped memory for tpu_custom_call.1']
    #allocation14 [shape = 'u8[16384]{0}', space=vmem, size = 0x4000, scoped, tag = 'input window, operand 2, single buffered']
    #allocation15 [shape = 'u8[16384]{0}', space=vmem, size = 0x4000, scoped, tag = 'input window, operand 3, single buffered']
    #allocation16 [shape = 's32[1]{0}', space=sflag, size = 0x4, scoped, tag = 'scoped memory for tpu_custom_call.1']
    #allocation17 [shape = 'u8[65536]{0}', space=vmem, size = 0x10000, scoped, tag = 'input window, operand 7, single buffered']
    #allocation18 [shape = 'u8[512]{0}', space=vmem, size = 0x400, scoped, tag = 'output window, operand 0, single buffered']
    %20 = vsyncpa [#allocation10], 0
    %21 = vsyncpa [#allocation13], 0
    %22 = vsyncpa [#allocation16], 0
    %23 = vsyncpa [#allocation11], 0
    loop: start=0, step=1, limit=5
    $region2: #{tpu_custom_call.1} parent=1 // loop_pre_header
      _
    $region3: #{tpu_custom_call.1} parent=1 // loop_header
      %s25 = sphi 0, %s29
      %p26 = scmp.ge.s32.totalorder %s25, 5
      %s32 = sphi 0, %s44
      %s33 = sphi 0, %s40
      %s34 = sphi 0, %s32
      %s35 = sphi 0, %s33
      %s36 = sphi 0, %s34
      %s37 = sphi 0, %s35
      %s47 = sphi 0, %s49
      %s50 = sphi 0, %s47
      %s51 = sphi 0, %s50
      %s67 = sphi 0, %s51
      %s73 = sphi 0, %s75
      %s76 = sphi 0, %s73
      %s77 = sphi 0, %s76
      %s93 = sphi 0, %s77
      %s97 = sphi 0, %s97
      %s99 = sphi 0, %s97
      %s100 = sphi 0, %s99
      %s114 = sphi 0, %s100
      %s118 = sphi 0, %s118
      %s120 = sphi 0, %s118
      %s121 = sphi 0, %s120
      %s135 = sphi 0, %s121
      %s139 = sphi 0, %s139
      %s141 = sphi 0, %s139
      %s142 = sphi 0, %s141
      %s156 = sphi 0, %s142
      %s160 = sphi 0, %s160
      %s162 = sphi 0, %s160
      %s163 = sphi 0, %s162
      %s177 = sphi 0, %s163
      %s181 = sphi 0, %s181
      %s183 = sphi 0, %s181
      %s184 = sphi 0, %s183
      %s198 = sphi 0, %s184
      %s202 = sphi 0, %s202
      %s204 = sphi 0, %s202
      %s205 = sphi 0, %s204
      %s219 = sphi 0, %s205
      %s223 = sphi 0, %s223
      %s225 = sphi 0, %s223
      %s226 = sphi 0, %s225
      %s240 = sphi 0, %s226
      %s244 = sphi 0, %s244
      %s246 = sphi 0, %s244
      %s247 = sphi 0, %s246
      %s261 = sphi 0, %s247
      %s265 = sphi 0, %s265
      %s267 = sphi 0, %s265
      %s268 = sphi 0, %s267
      %s282 = sphi 0, %s268
      %s286 = sphi 0, %s286
      %s288 = sphi 0, %s286
      %s289 = sphi 0, %s288
      %s303 = sphi 0, %s289
      %s307 = sphi 0, %s307
      %s309 = sphi 0, %s307
      %s310 = sphi 0, %s309
      %s324 = sphi 0, %s310
      %s330 = sphi 0, %s332
      %s333 = sphi 0, %s330
      %s334 = sphi 0, %s333
      %s350 = sphi 0, %s334
    $region4: #{tpu_custom_call.1} parent=1 // loop_header_branch
      %28 = sbr.rel (%p26) target = $region8
    $region5: #{tpu_custom_call.1} parent=1 // loop_body
      %s30 = ssub.s32 %s25, 1
      %s31 = ssub.s32 %s25, 2
      %s38 = sadd.s32 1, %s33
      %p39 = scmp.ge.s32.totalorder %s38, 1
      %s40 = scalar_select %p39, 0, %s38
      %s41 = sadd.s32 1, %s32
      %s42 = scalar_select %p39, %s41, %s32
      %p43 = scmp.ge.s32.totalorder %s42, 3
      %s44 = scalar_select %p43, 0, %s42
      %s45 = ssub.s32 %s33, %s40
      %p46 = scmp.eq.s32.totalorder %s45, 0
      %s48 = sadd.s32 %s47, 1
      %s49 = scalar_select %p46, %s47, %s48
      %p52 = pneg %p46
      %p53 = scmp.eq.s32.totalorder %s25, 2
      %p54 = por %p52, %p53
      %p55 = scmp.ne.s32.totalorder %s47, %s50
      %p56 = scmp.eq.s32.totalorder %s25, 0
      %p57 = por %p55, %p56
      %p58 = scmp.ne.s32.totalorder %s47, %s50
      %p59 = scmp.eq.s32.totalorder %s30, 2
      %p60 = por %p58, %p59
      %p61 = scmp.ne.s32.totalorder %s50, %s51
      %p62 = scmp.eq.s32.totalorder %s30, 0
      %p63 = por %p61, %p62
      %p64 = scmp.ne.s32.totalorder %s50, %s51
      %p65 = scmp.eq.s32.totalorder %s31, 2
      %p66 = por %p64, %p65
      %p68 = scmp.ne.s32.totalorder %s51, %s67
      %p69 = scmp.eq.s32.totalorder %s31, 0
      %p70 = por %p68, %p69
      %s71 = ssub.s32 %s33, %s40
      %p72 = scmp.eq.s32.totalorder %s71, 0
      %s74 = sadd.s32 %s73, 1
      %s75 = scalar_select %p72, %s73, %s74
      %p78 = pneg %p72
      %p79 = scmp.eq.s32.totalorder %s25, 2
      %p80 = por %p78, %p79
      %p81 = scmp.ne.s32.totalorder %s73, %s76
      %p82 = scmp.eq.s32.totalorder %s25, 0
      %p83 = por %p81, %p82
      %p84 = scmp.ne.s32.totalorder %s73, %s76
      %p85 = scmp.eq.s32.totalorder %s30, 2
      %p86 = por %p84, %p85
      %p87 = scmp.ne.s32.totalorder %s76, %s77
      %p88 = scmp.eq.s32.totalorder %s30, 0
      %p89 = por %p87, %p88
      %p90 = scmp.ne.s32.totalorder %s76, %s77
      %p91 = scmp.eq.s32.totalorder %s31, 2
      %p92 = por %p90, %p91
      %p94 = scmp.ne.s32.totalorder %s77, %s93
      %p95 = scmp.eq.s32.totalorder %s31, 0
      %p96 = por %p94, %p95
      %s98 = sadd.s32 %s97, 1
      %p101 = scmp.eq.s32.totalorder %s25, 2
      %p102 = scmp.ne.s32.totalorder %s97, %s99
      %p103 = scmp.eq.s32.totalorder %s25, 0
      %p104 = por %p102, %p103
      %p105 = scmp.ne.s32.totalorder %s97, %s99
      %p106 = scmp.eq.s32.totalorder %s30, 2
      %p107 = por %p105, %p106
      %p108 = scmp.ne.s32.totalorder %s99, %s100
      %p109 = scmp.eq.s32.totalorder %s30, 0
      %p110 = por %p108, %p109
      %p111 = scmp.ne.s32.totalorder %s99, %s100
      %p112 = scmp.eq.s32.totalorder %s31, 2
      %p113 = por %p111, %p112
      %p115 = scmp.ne.s32.totalorder %s100, %s114
      %p116 = scmp.eq.s32.totalorder %s31, 0
      %p117 = por %p115, %p116
      %s119 = sadd.s32 %s118, 1
      %p122 = scmp.eq.s32.totalorder %s25, 2
      %p123 = scmp.ne.s32.totalorder %s118, %s120
      %p124 = scmp.eq.s32.totalorder %s25, 0
      %p125 = por %p123, %p124
      %p126 = scmp.ne.s32.totalorder %s118, %s120
      %p127 = scmp.eq.s32.totalorder %s30, 2
      %p128 = por %p126, %p127
      %p129 = scmp.ne.s32.totalorder %s120, %s121
      %p130 = scmp.eq.s32.totalorder %s30, 0
      %p131 = por %p129, %p130
      %p132 = scmp.ne.s32.totalorder %s120, %s121
      %p133 = scmp.eq.s32.totalorder %s31, 2
      %p134 = por %p132, %p133
      %p136 = scmp.ne.s32.totalorder %s121, %s135
      %p137 = scmp.eq.s32.totalorder %s31, 0
      %p138 = por %p136, %p137
      %s140 = sadd.s32 %s139, 1
      %p143 = scmp.eq.s32.totalorder %s25, 2
      %p144 = scmp.ne.s32.totalorder %s139, %s141
      %p145 = scmp.eq.s32.totalorder %s25, 0
      %p146 = por %p144, %p145
      %p147 = scmp.ne.s32.totalorder %s139, %s141
      %p148 = scmp.eq.s32.totalorder %s30, 2
      %p149 = por %p147, %p148
      %p150 = scmp.ne.s32.totalorder %s141, %s142
      %p151 = scmp.eq.s32.totalorder %s30, 0
      %p152 = por %p150, %p151
      %p153 = scmp.ne.s32.totalorder %s141, %s142
      %p154 = scmp.eq.s32.totalorder %s31, 2
      %p155 = por %p153, %p154
      %p157 = scmp.ne.s32.totalorder %s142, %s156
      %p158 = scmp.eq.s32.totalorder %s31, 0
      %p159 = por %p157, %p158
      %s161 = sadd.s32 %s160, 1
      %p164 = scmp.eq.s32.totalorder %s25, 2
      %p165 = scmp.ne.s32.totalorder %s160, %s162
      %p166 = scmp.eq.s32.totalorder %s25, 0
      %p167 = por %p165, %p166
      %p168 = scmp.ne.s32.totalorder %s160, %s162
      %p169 = scmp.eq.s32.totalorder %s30, 2
      %p170 = por %p168, %p169
      %p171 = scmp.ne.s32.totalorder %s162, %s163
      %p172 = scmp.eq.s32.totalorder %s30, 0
      %p173 = por %p171, %p172
      %p174 = scmp.ne.s32.totalorder %s162, %s163
      %p175 = scmp.eq.s32.totalorder %s31, 2
      %p176 = por %p174, %p175
      %p178 = scmp.ne.s32.totalorder %s163, %s177
      %p179 = scmp.eq.s32.totalorder %s31, 0
      %p180 = por %p178, %p179
      %s182 = sadd.s32 %s181, 1
      %p185 = scmp.eq.s32.totalorder %s25, 2
      %p186 = scmp.ne.s32.totalorder %s181, %s183
      %p187 = scmp.eq.s32.totalorder %s25, 0
      %p188 = por %p186, %p187
      %p189 = scmp.ne.s32.totalorder %s181, %s183
      %p190 = scmp.eq.s32.totalorder %s30, 2
      %p191 = por %p189, %p190
      %p192 = scmp.ne.s32.totalorder %s183, %s184
      %p193 = scmp.eq.s32.totalorder %s30, 0
      %p194 = por %p192, %p193
      %p195 = scmp.ne.s32.totalorder %s183, %s184
      %p196 = scmp.eq.s32.totalorder %s31, 2
      %p197 = por %p195, %p196
      %p199 = scmp.ne.s32.totalorder %s184, %s198
      %p200 = scmp.eq.s32.totalorder %s31, 0
      %p201 = por %p199, %p200
      %s203 = sadd.s32 %s202, 1
      %p206 = scmp.eq.s32.totalorder %s25, 2
      %p207 = scmp.ne.s32.totalorder %s202, %s204
      %p208 = scmp.eq.s32.totalorder %s25, 0
      %p209 = por %p207, %p208
      %p210 = scmp.ne.s32.totalorder %s202, %s204
      %p211 = scmp.eq.s32.totalorder %s30, 2
      %p212 = por %p210, %p211
      %p213 = scmp.ne.s32.totalorder %s204, %s205
      %p214 = scmp.eq.s32.totalorder %s30, 0
      %p215 = por %p213, %p214
      %p216 = scmp.ne.s32.totalorder %s204, %s205
      %p217 = scmp.eq.s32.totalorder %s31, 2
      %p218 = por %p216, %p217
      %p220 = scmp.ne.s32.totalorder %s205, %s219
      %p221 = scmp.eq.s32.totalorder %s31, 0
      %p222 = por %p220, %p221
      %s224 = sadd.s32 %s223, 1
      %p227 = scmp.eq.s32.totalorder %s25, 2
      %p228 = scmp.ne.s32.totalorder %s223, %s225
      %p229 = scmp.eq.s32.totalorder %s25, 0
      %p230 = por %p228, %p229
      %p231 = scmp.ne.s32.totalorder %s223, %s225
      %p232 = scmp.eq.s32.totalorder %s30, 2
      %p233 = por %p231, %p232
      %p234 = scmp.ne.s32.totalorder %s225, %s226
      %p235 = scmp.eq.s32.totalorder %s30, 0
      %p236 = por %p234, %p235
      %p237 = scmp.ne.s32.totalorder %s225, %s226
      %p238 = scmp.eq.s32.totalorder %s31, 2
      %p239 = por %p237, %p238
      %p241 = scmp.ne.s32.totalorder %s226, %s240
      %p242 = scmp.eq.s32.totalorder %s31, 0
      %p243 = por %p241, %p242
      %s245 = sadd.s32 %s244, 1
      %p248 = scmp.eq.s32.totalorder %s25, 2
      %p249 = scmp.ne.s32.totalorder %s244, %s246
      %p250 = scmp.eq.s32.totalorder %s25, 0
      %p251 = por %p249, %p250
      %p252 = scmp.ne.s32.totalorder %s244, %s246
      %p253 = scmp.eq.s32.totalorder %s30, 2
      %p254 = por %p252, %p253
      %p255 = scmp.ne.s32.totalorder %s246, %s247
      %p256 = scmp.eq.s32.totalorder %s30, 0
      %p257 = por %p255, %p256
      %p258 = scmp.ne.s32.totalorder %s246, %s247
      %p259 = scmp.eq.s32.totalorder %s31, 2
      %p260 = por %p258, %p259
      %p262 = scmp.ne.s32.totalorder %s247, %s261
      %p263 = scmp.eq.s32.totalorder %s31, 0
      %p264 = por %p262, %p263
      %s266 = sadd.s32 %s265, 1
      %p269 = scmp.eq.s32.totalorder %s25, 2
      %p270 = scmp.ne.s32.totalorder %s265, %s267
      %p271 = scmp.eq.s32.totalorder %s25, 0
      %p272 = por %p270, %p271
      %p273 = scmp.ne.s32.totalorder %s265, %s267
      %p274 = scmp.eq.s32.totalorder %s30, 2
      %p275 = por %p273, %p274
      %p276 = scmp.ne.s32.totalorder %s267, %s268
      %p277 = scmp.eq.s32.totalorder %s30, 0
      %p278 = por %p276, %p277
      %p279 = scmp.ne.s32.totalorder %s267, %s268
      %p280 = scmp.eq.s32.totalorder %s31, 2
      %p281 = por %p279, %p280
      %p283 = scmp.ne.s32.totalorder %s268, %s282
      %p284 = scmp.eq.s32.totalorder %s31, 0
      %p285 = por %p283, %p284
      %s287 = sadd.s32 %s286, 1
      %p290 = scmp.eq.s32.totalorder %s25, 2
      %p291 = scmp.ne.s32.totalorder %s286, %s288
      %p292 = scmp.eq.s32.totalorder %s25, 0
      %p293 = por %p291, %p292
      %p294 = scmp.ne.s32.totalorder %s286, %s288
      %p295 = scmp.eq.s32.totalorder %s30, 2
      %p296 = por %p294, %p295
      %p297 = scmp.ne.s32.totalorder %s288, %s289
      %p298 = scmp.eq.s32.totalorder %s30, 0
      %p299 = por %p297, %p298
      %p300 = scmp.ne.s32.totalorder %s288, %s289
      %p301 = scmp.eq.s32.totalorder %s31, 2
      %p302 = por %p300, %p301
      %p304 = scmp.ne.s32.totalorder %s289, %s303
      %p305 = scmp.eq.s32.totalorder %s31, 0
      %p306 = por %p304, %p305
      %s308 = sadd.s32 %s307, 1
      %p311 = scmp.eq.s32.totalorder %s25, 2
      %p312 = scmp.ne.s32.totalorder %s307, %s309
      %p313 = scmp.eq.s32.totalorder %s25, 0
      %p314 = por %p312, %p313
      %p315 = scmp.ne.s32.totalorder %s307, %s309
      %p316 = scmp.eq.s32.totalorder %s30, 2
      %p317 = por %p315, %p316
      %p318 = scmp.ne.s32.totalorder %s309, %s310
      %p319 = scmp.eq.s32.totalorder %s30, 0
      %p320 = por %p318, %p319
      %p321 = scmp.ne.s32.totalorder %s309, %s310
      %p322 = scmp.eq.s32.totalorder %s31, 2
      %p323 = por %p321, %p322
      %p325 = scmp.ne.s32.totalorder %s310, %s324
      %p326 = scmp.eq.s32.totalorder %s31, 0
      %p327 = por %p325, %p326
      %s328 = ssub.s32 %s33, %s40
      %p329 = scmp.eq.s32.totalorder %s328, 0
      %s331 = sadd.s32 %s330, 1
      %s332 = scalar_select %p329, %s330, %s331
      %p335 = pneg %p329
      %p336 = scmp.eq.s32.totalorder %s25, 2
      %p337 = por %p335, %p336
      %p338 = scmp.ne.s32.totalorder %s330, %s333
      %p339 = scmp.eq.s32.totalorder %s25, 0
      %p340 = por %p338, %p339
      %p341 = scmp.ne.s32.totalorder %s330, %s333
      %p342 = scmp.eq.s32.totalorder %s30, 2
      %p343 = por %p341, %p342
      %p344 = scmp.ne.s32.totalorder %s333, %s334
      %p345 = scmp.eq.s32.totalorder %s30, 0
      %p346 = por %p344, %p345
      %p347 = scmp.ne.s32.totalorder %s333, %s334
      %p348 = scmp.eq.s32.totalorder %s31, 2
      %p349 = por %p347, %p348
      %p351 = scmp.ne.s32.totalorder %s334, %s350
      %p352 = scmp.eq.s32.totalorder %s31, 0
      %p353 = por %p351, %p352
      %p354 = scmp.le.s32.totalorder 1, %s25
      %p355 = scmp.lt.s32.totalorder %s25, 4
      %p356 = pnand %p354, %p355
      %p357 = pneg %p356
      // Predicated region
      $region9: #{tpu_custom_call.1} parent=5 // pred_check
        _
      $region10: #{tpu_custom_call.1} parent=5 // pred_check_branch
        %359 = sbr.rel (%p356) target = $region12
      $region11: #{tpu_custom_call.1} parent=5 // pred_region
        %s360 = ssub.s32 %s25, 1
        // Predicated region
        $region13: #{tpu_custom_call.1} parent=11 // pred_check
          %p361 = pneg %p63
        $region14: #{tpu_custom_call.1} parent=11 // pred_check_branch
          %363 = sbr.rel (%p361) target = $region16
        $region15: #{tpu_custom_call.1} parent=11 // pred_region
          %s365 = ssub.s32 128, 128
          %366 = vsyncadd [#allocation10], %s365
          %s367 = smul.addr %s35, 128
          %s368 = scalar_lea.hbm %s0, %s367
          %s370 = sshll.u32 [#allocation9], 4
          %s371 = int_to_ptr.vmem [resolvable:$true] %s370
          %373 = dma.hbm_to_vmem [thread:$0]  %s368, 128, %s371, [#allocation10]
        $region16: #{tpu_custom_call.1} parent=11 // pred_fallthru
          _
        // Predicated region
        $region17: #{tpu_custom_call.1} parent=11 // pred_check
          %p374 = pneg %p89
        $region18: #{tpu_custom_call.1} parent=11 // pred_check_branch
          %376 = sbr.rel (%p374) target = $region20
        $region19: #{tpu_custom_call.1} parent=11 // pred_region
          %s378 = ssub.s32 128, 128
          %379 = vsyncadd [#allocation13], %s378
          %s380 = smul.addr %s35, 128
          %s381 = scalar_lea.hbm %s1, %s380
          %s383 = sshll.u32 [#allocation12], 4
          %s384 = int_to_ptr.vmem [resolvable:$true] %s383
          %386 = dma.hbm_to_vmem [thread:$0]  %s381, 128, %s384, [#allocation13]
        $region20: #{tpu_custom_call.1} parent=11 // pred_fallthru
          _
        // Predicated region
        $region21: #{tpu_custom_call.1} parent=11 // pred_check
          %p387 = pneg %p110
        $region22: #{tpu_custom_call.1} parent=11 // pred_check_branch
          %389 = sbr.rel (%p387) target = $region24
        $region23: #{tpu_custom_call.1} parent=11 // pred_region
          %s391 = ssub.s32 512, 512
          %392 = vsyncadd [#allocation13], %s391
          %s393 = sshll.u32 [#allocation14], 4
          %s394 = int_to_ptr.vmem [resolvable:$true] %s393
          %399 = dma.hbm_to_vmem [thread:$0]  %s2, 512, %s394, [#allocation13], 128, 128, 8
        $region24: #{tpu_custom_call.1} parent=11 // pred_fallthru
          _
        // Predicated region
        $region25: #{tpu_custom_call.1} parent=11 // pred_check
          %p400 = pneg %p131
        $region26: #{tpu_custom_call.1} parent=11 // pred_check_branch
          %402 = sbr.rel (%p400) target = $region28
        $region27: #{tpu_custom_call.1} parent=11 // pred_region
          %s404 = ssub.s32 512, 512
          %405 = vsyncadd [#allocation16], %s404
          %s406 = sshll.u32 [#allocation15], 4
          %s407 = int_to_ptr.vmem [resolvable:$true] %s406
          %412 = dma.hbm_to_vmem [thread:$0]  %s3, 512, %s407, [#allocation16], 128, 128, 8
        $region28: #{tpu_custom_call.1} parent=11 // pred_fallthru
          _
        // Predicated region
        $region29: #{tpu_custom_call.1} parent=11 // pred_check
          %p413 = pneg %p152
        $region30: #{tpu_custom_call.1} parent=11 // pred_check_branch
          %415 = sbr.rel (%p413) target = $region32
        $region31: #{tpu_custom_call.1} parent=11 // pred_region
          _
        $region32: #{tpu_custom_call.1} parent=11 // pred_fallthru
          _
        // Predicated region
        $region33: #{tpu_custom_call.1} parent=11 // pred_check
          %p416 = pneg %p173
        $region34: #{tpu_custom_call.1} parent=11 // pred_check_branch
          %418 = sbr.rel (%p416) target = $region36
        $region35: #{tpu_custom_call.1} parent=11 // pred_region
          _
        $region36: #{tpu_custom_call.1} parent=11 // pred_fallthru
          _
        // Predicated region
        $region37: #{tpu_custom_call.1} parent=11 // pred_check
          %p419 = pneg %p194
        $region38: #{tpu_custom_call.1} parent=11 // pred_check_branch
          %421 = sbr.rel (%p419) target = $region40
        $region39: #{tpu_custom_call.1} parent=11 // pred_region
          _
        $region40: #{tpu_custom_call.1} parent=11 // pred_fallthru
          _
        // Predicated region
        $region41: #{tpu_custom_call.1} parent=11 // pred_check
          %p422 = pneg %p215
        $region42: #{tpu_custom_call.1} parent=11 // pred_check_branch
          %424 = sbr.rel (%p422) target = $region44
        $region43: #{tpu_custom_call.1} parent=11 // pred_region
          %s426 = ssub.s32 2048, 2048
          %427 = vsyncadd [#allocation16], %s426
          %s428 = sshll.u32 [#allocation17], 4
          %s429 = int_to_ptr.vmem [resolvable:$true] %s428
          %434 = dma.hbm_to_vmem [thread:$0]  %s7, 2048, %s429, [#allocation16], 64, 64, 4
        $region44: #{tpu_custom_call.1} parent=11 // pred_fallthru
          _
        // Predicated region
        $region45: #{tpu_custom_call.1} parent=11 // pred_check
          %p435 = pneg %p236
        $region46: #{tpu_custom_call.1} parent=11 // pred_check_branch
          %437 = sbr.rel (%p435) target = $region48
        $region47: #{tpu_custom_call.1} parent=11 // pred_region
          _
        $region48: #{tpu_custom_call.1} parent=11 // pred_fallthru
          _
        // Predicated region
        $region49: #{tpu_custom_call.1} parent=11 // pred_check
          %p438 = pneg %p257
        $region50: #{tpu_custom_call.1} parent=11 // pred_check_branch
          %440 = sbr.rel (%p438) target = $region52
        $region51: #{tpu_custom_call.1} parent=11 // pred_region
          _
        $region52: #{tpu_custom_call.1} parent=11 // pred_fallthru
          _
        // Predicated region
        $region53: #{tpu_custom_call.1} parent=11 // pred_check
          %p441 = pneg %p278
        $region54: #{tpu_custom_call.1} parent=11 // pred_check_branch
          %443 = sbr.rel (%p441) target = $region56
        $region55: #{tpu_custom_call.1} parent=11 // pred_region
          _
        $region56: #{tpu_custom_call.1} parent=11 // pred_fallthru
          _
        // Predicated region
        $region57: #{tpu_custom_call.1} parent=11 // pred_check
          %p444 = pneg %p299
        $region58: #{tpu_custom_call.1} parent=11 // pred_check_branch
          %446 = sbr.rel (%p444) target = $region60
        $region59: #{tpu_custom_call.1} parent=11 // pred_region
          _
        $region60: #{tpu_custom_call.1} parent=11 // pred_fallthru
          _
        // Predicated region
        $region61: #{tpu_custom_call.1} parent=11 // pred_check
          %p447 = pneg %p320
        $region62: #{tpu_custom_call.1} parent=11 // pred_check_branch
          %449 = sbr.rel (%p447) target = $region64
        $region63: #{tpu_custom_call.1} parent=11 // pred_region
          _
        $region64: #{tpu_custom_call.1} parent=11 // pred_fallthru
          _
      $region12: #{tpu_custom_call.1} parent=5 // pred_fallthru
        _
      %p450 = scmp.lt.s32.totalorder %s25, 3
      // Predicated region
      $region65: #{tpu_custom_call.1} parent=5 // pred_check
        %p451 = pneg %p450
      $region66: #{tpu_custom_call.1} parent=5 // pred_check_branch
        %453 = sbr.rel (%p451) target = $region68
      $region67: #{tpu_custom_call.1} parent=5 // pred_region
        _
      $region68: #{tpu_custom_call.1} parent=5 // pred_fallthru
        _
      %p454 = scmp.le.s32.totalorder 1, %s25
      %p455 = scmp.lt.s32.totalorder %s25, 4
      %p456 = pnand %p454, %p455
      %p457 = pneg %p456
      // Predicated region
      $region69: #{tpu_custom_call.1} parent=5 // pred_check
        _
      $region70: #{tpu_custom_call.1} parent=5 // pred_check_branch
        %459 = sbr.rel (%p456) target = $region72
      $region71: #{tpu_custom_call.1} parent=5 // pred_region
        %s460 = ssub.s32 %s25, 1
        // Predicated region
        $region73: #{tpu_custom_call.1} parent=71 // pred_check
          %p461 = pneg %p63
        $region74: #{tpu_custom_call.1} parent=71 // pred_check_branch
          %463 = sbr.rel (%p461) target = $region76
        $region75: #{tpu_custom_call.1} parent=71 // pred_region
          %464 = dma.done [#allocation10], 128
        $region76: #{tpu_custom_call.1} parent=71 // pred_fallthru
          _
        // Predicated region
        $region77: #{tpu_custom_call.1} parent=71 // pred_check
          %p465 = pneg %p89
        $region78: #{tpu_custom_call.1} parent=71 // pred_check_branch
          %467 = sbr.rel (%p465) target = $region80
        $region79: #{tpu_custom_call.1} parent=71 // pred_region
          %468 = dma.done [#allocation13], 128
        $region80: #{tpu_custom_call.1} parent=71 // pred_fallthru
          _
        // Predicated region
        $region81: #{tpu_custom_call.1} parent=71 // pred_check
          %p469 = pneg %p110
        $region82: #{tpu_custom_call.1} parent=71 // pred_check_branch
          %471 = sbr.rel (%p469) target = $region84
        $region83: #{tpu_custom_call.1} parent=71 // pred_region
          %472 = dma.done [#allocation13], 512
        $region84: #{tpu_custom_call.1} parent=71 // pred_fallthru
          _
        // Predicated region
        $region85: #{tpu_custom_call.1} parent=71 // pred_check
          %p473 = pneg %p131
        $region86: #{tpu_custom_call.1} parent=71 // pred_check_branch
          %475 = sbr.rel (%p473) target = $region88
        $region87: #{tpu_custom_call.1} parent=71 // pred_region
          %476 = dma.done [#allocation16], 512
        $region88: #{tpu_custom_call.1} parent=71 // pred_fallthru
          _
        // Predicated region
        $region89: #{tpu_custom_call.1} parent=71 // pred_check
          %p477 = pneg %p215
        $region90: #{tpu_custom_call.1} parent=71 // pred_check_branch
          %479 = sbr.rel (%p477) target = $region92
        $region91: #{tpu_custom_call.1} parent=71 // pred_region
          %480 = dma.done [#allocation16], 2048
        $region92: #{tpu_custom_call.1} parent=71 // pred_fallthru
          _
        %p481 = pneg %p63
        %p482 = pneg %p60
        %p483 = pneg %p89
        %p484 = pneg %p86
        %p485 = pneg %p110
        %p486 = pneg %p107
        %p487 = pneg %p131
        %p488 = pneg %p128
        %p489 = pneg %p152
        %p490 = pneg %p149
        %p491 = pneg %p173
        %p492 = pneg %p170
        %p493 = pneg %p194
        %p494 = pneg %p191
        %p495 = pneg %p215
        %p496 = pneg %p212
        %p497 = pneg %p236
        %p498 = pneg %p233
        %p499 = pneg %p257
        %p500 = pneg %p254
        %p501 = pneg %p278
        %p502 = pneg %p275
        %p503 = pneg %p299
        %p504 = pneg %p296
        %p505 = pneg %p320
        %p506 = pneg %p317
        %p507 = pneg %p346
        %p508 = pneg %p343
        %p510 = scmp.eq.s32.totalorder %s34, 0
        // Predicated region
        $region93: #{tpu_custom_call.1} parent=71 // pred_check
          %p511 = pneg %p510
        $region94: #{tpu_custom_call.1} parent=71 // pred_check_branch
          %513 = sbr.rel (%p511) target = $region96
        $region95: #{tpu_custom_call.1} parent=71 // pred_region
          %p514 = scmp.eq.s32.totalorder %s35, 0
          // Predicated region
          $region97: #{tpu_custom_call.1} parent=95 // pred_check
            %p515 = pneg %p514
          $region98: #{tpu_custom_call.1} parent=95 // pred_check_branch
            %517 = sbr.rel (%p515) target = $region100
          $region99: #{tpu_custom_call.1} parent=95 // pred_region
            %v518 = vlaneseq
            %vm519 = vcmp.ge.s32.totalorder %v518, 0
            %vm520 = vcmp.lt.s32.totalorder %v518, 256
            %vm521 = vmand %vm519, %vm520
            %522 = vst.msk [vmem:[#allocation4] sm:$0x3] %vm521, 0.0
            %523 = vst.msk [vmem:[#allocation5] sm:$0x3] %vm521, 0.0
          $region100: #{tpu_custom_call.1} parent=95 // pred_fallthru
            _
          %v524 = vld [vmem:[#allocation9] sm:$0xff]
          %v525 = vpack.c.bf16 %v524, %v524
          %v526 = vld [vmem:[#allocation12] sm:$0xff]
          %v527 = vpack.c.bf16 %v526, %v526
          %v528 = vld [vmem:[#allocation14] sm:$0xff]
          %v529 = vld [vmem:[#allocation14 + $0x8] sm:$0xff]
          %v530 = vld [vmem:[#allocation14 + $0x10] sm:$0xff]
          %v531 = vld [vmem:[#allocation14 + $0x18] sm:$0xff]
          %v532 = vld [vmem:[#allocation15] sm:$0xff]
          %v533 = vld [vmem:[#allocation15 + $0x8] sm:$0xff]
          %v534 = vld [vmem:[#allocation15 + $0x10] sm:$0xff]
          %v535 = vld [vmem:[#allocation15 + $0x18] sm:$0xff]
          %v540 = vunpack.c.l.b16 %v532
          %v541 = vunpack.c.h.b16 %v532
          %v542 = vunpack.c.l.b16 %v533
          %v543 = vunpack.c.h.b16 %v533
          %v544 = vunpack.c.l.b16 %v534
          %v545 = vunpack.c.h.b16 %v534
          %v546 = vunpack.c.l.b16 %v535
          %v547 = vunpack.c.h.b16 %v535
          %v548 = vpack.c.b16 %v542, %v540
          %v549 = vpack.c.b16 %v543, %v541
          %v550 = vpack.c.b16 %v546, %v544
          %v551 = vpack.c.b16 %v547, %v545
          %vm556 = vcmask 261120
          %v558 = vsel %vm556, %v527, 0
          %560 = vmatprep.subr.bf16.mxu0 %v549
          %561 = vmatpush1.bf16.msra.mxu0 %v548
          %562 = vmatprep.subr.bf16.mxu0 %v551
          %563 = vmatpush1.bf16.msra.mxu0 %v550
          %564 = vmatprep.subr.bf16.mxu0 0
          %565 = vmatpush1.bf16.msra.mxu0 0
          %566 = vmatprep.subr.bf16.mxu0 0
          %567 = vmatpush1.bf16.msra.mxu0 0
          %568 = vmatprep.subr.bf16.mxu0 0
          %569 = vmatpush1.bf16.msra.mxu0 0
          %570 = vmatprep.subr.bf16.mxu0 0
          %571 = vmatpush1.bf16.msra.mxu0 0
          %572 = vmatprep.subr.bf16.mxu0 0
          %573 = vmatpush1.bf16.msra.mxu0 0
          %574 = vmatprep.subr.bf16.mxu0 0
          %575 = vmatpush1.bf16.msra.mxu0 0
          %576 = vmatprep.subr.bf16.mxu0 0
          %577 = vmatpush1.bf16.msra.mxu0 0
          %578 = vmatprep.subr.bf16.mxu0 0
          %579 = vmatpush1.bf16.msra.mxu0 0
          %580 = vmatprep.subr.bf16.mxu0 0
          %581 = vmatpush1.bf16.msra.mxu0 0
          %582 = vmatprep.subr.bf16.mxu0 0
          %583 = vmatpush1.bf16.msra.mxu0 0
          %584 = vmatprep.subr.bf16.mxu0 0
          %585 = vmatpush1.bf16.msra.mxu0 0
          %586 = vmatprep.subr.bf16.mxu0 0
          %587 = vmatpush1.bf16.msra.mxu0 0
          %588 = vmatprep.subr.bf16.mxu0 0
          %589 = vmatpush1.bf16.msra.mxu0 0
          %590 = vmatprep.subr.bf16.mxu0 0
          %591 = vmatpush1.bf16.msra.mxu0 0
          %592 = vmatprep.mubr.bf16.mxu0 0
          %593 = vmatmul.mubr.bf16.gmra.mrb[0].mxu0 %v558
          %v594 = vpop.f32.mrb[0].mxu0
          %v595 = vadd.f32 0.0, %v594
          %v596 = vpop.f32.mrb[0].mxu0
          %v597 = vadd.f32 0.0, %v596
          %v598 = vpop.f32.mrb[0].mxu0
          %v599 = vpop.f32.mrb[0].mxu0
          %600 = vdwg.mxu0
          %v605 = vunpack.c.l.b16 %v528
          %v606 = vunpack.c.h.b16 %v528
          %v607 = vunpack.c.l.b16 %v529
          %v608 = vunpack.c.h.b16 %v529
          %v609 = vunpack.c.l.b16 %v530
          %v610 = vunpack.c.h.b16 %v530
          %v611 = vunpack.c.l.b16 %v531
          %v612 = vunpack.c.h.b16 %v531
          %v613 = vpack.c.b16 %v607, %v605
          %v614 = vpack.c.b16 %v608, %v606
          %v615 = vpack.c.b16 %v611, %v609
          %v616 = vpack.c.b16 %v612, %v610
          %v622 = vsel %vm556, %v525, 0
          %624 = vmatprep.subr.bf16.mxu0 %v614
          %625 = vmatpush1.bf16.msra.mxu0 %v613
          %626 = vmatprep.subr.bf16.mxu0 %v616
          %627 = vmatpush1.bf16.msra.mxu0 %v615
          %628 = vmatprep.subr.bf16.mxu0 0
          %629 = vmatpush1.bf16.msra.mxu0 0
          %630 = vmatprep.subr.bf16.mxu0 0
          %631 = vmatpush1.bf16.msra.mxu0 0
          %632 = vmatprep.subr.bf16.mxu0 0
          %633 = vmatpush1.bf16.msra.mxu0 0
          %634 = vmatprep.subr.bf16.mxu0 0
          %635 = vmatpush1.bf16.msra.mxu0 0
          %636 = vmatprep.subr.bf16.mxu0 0
          %637 = vmatpush1.bf16.msra.mxu0 0
          %638 = vmatprep.subr.bf16.mxu0 0
          %639 = vmatpush1.bf16.msra.mxu0 0
          %640 = vmatprep.subr.bf16.mxu0 0
          %641 = vmatpush1.bf16.msra.mxu0 0
          %642 = vmatprep.subr.bf16.mxu0 0
          %643 = vmatpush1.bf16.msra.mxu0 0
          %644 = vmatprep.subr.bf16.mxu0 0
          %645 = vmatpush1.bf16.msra.mxu0 0
          %646 = vmatprep.subr.bf16.mxu0 0
          %647 = vmatpush1.bf16.msra.mxu0 0
          %648 = vmatprep.subr.bf16.mxu0 0
          %649 = vmatpush1.bf16.msra.mxu0 0
          %650 = vmatprep.subr.bf16.mxu0 0
          %651 = vmatpush1.bf16.msra.mxu0 0
          %652 = vmatprep.subr.bf16.mxu0 0
          %653 = vmatpush1.bf16.msra.mxu0 0
          %654 = vmatprep.subr.bf16.mxu0 0
          %655 = vmatpush1.bf16.msra.mxu0 0
          %656 = vmatprep.mubr.bf16.mxu0 0
          %657 = vmatmul.mubr.bf16.gmra.mrb[0].mxu0 %v622
          %v658 = vpop.f32.mrb[0].mxu0
          %v659 = vadd.f32 %v595, %v658
          %v660 = vpop.f32.mrb[0].mxu0
          %v661 = vadd.f32 %v597, %v660
          %v662 = vpop.f32.mrb[0].mxu0
          %v663 = vpop.f32.mrb[0].mxu0
          %664 = vdwg.mxu0
          %v665 = vld [vmem:[%s4] sm:$0x3]
          %v667 = vlaneseq
          %v668 = vshrl.u32 %v667, 7
          %v669 = vsub.s32 0, %v668
          %v670 = vrot.slane %v665, %v669
          %v671 = vlaneseq
          %v672 = vshrl.u32 %v671, 7
          %v673 = vsub.s32 1, %v672
          %v674 = vrot.slane %v665, %v673
          %v677 = vadd.f32 %v659, %v670
          %v678 = vadd.f32 %v661, %v674
          %vm679 = vcmp.gt.f32.partialorder %v677, 0.0
          %vm680 = vcmp.gt.f32.partialorder %v678, 0.0
          %v681 = vmul.f32 %v677, 0.2
          %v682 = vmul.f32 %v678, 0.2
          %v683 = vsel %vm679, %v677, %v681
          %v684 = vsel %vm680, %v678, %v682
          %v685 = vpack.c.bf16 %v683, %v683
          %v686 = vpack.c.bf16 %v684, %v684
          %v689 = vunpack.c.l.b16 %v685
          %v690 = vunpack.c.l.b16 %v686
          %v691 = vpack.c.b16 %v690, %v689
          %s693 = smul.u32 %s35, 2
          %s694 = smul.addr %s693, 4
          %s695 = scalar_lea.vmem [#allocation2], %s694
          %696 = vst [vmem:[%s695] sm:$0xff] %v691
          %v697 = vld [vmem:[#allocation4] sm:$0x3]
          %v698 = vrot.slane %v683, 4
          %v699 = vadd.f32 %v683, %v698
          %v700 = vrot.slane %v699, 2
          %v701 = vadd.f32 %v699, %v700
          %v702 = vrot.slane %v701, 1
          %v703 = vadd.f32 %v701, %v702
          %v704 = vrot.slane %v684, 4
          %v705 = vadd.f32 %v684, %v704
          %v706 = vrot.slane %v705, 2
          %v707 = vadd.f32 %v705, %v706
          %v708 = vrot.slane %v707, 1
          %v709 = vadd.f32 %v707, %v708
          %v712 = vcombine.low %v703, %v709
          %v714 = vunpack.c.l.s4 1966171168
          %v715 = vunpack.c.0.s8 %v714
          %v716 = vlaneseq
          %v717 = vshrl.u32 %v716, 7
          %v718 = vsub.s32 %v715, %v717
          %v719 = vrot.slane %v712, %v718
          %v721 = vunpack.c.l.s4 1966171168
          %v722 = vunpack.c.0.s8 %v721
          %v723 = vlaneseq
          %v724 = vshrl.u32 %v723, 7
          %v725 = vsub.s32 %v722, %v724
          %v726 = vrot.slane %v719, %v725
          %v728 = vadd.f32 %v697, %v726
          %v729 = vlaneseq
          %vm730 = vcmp.ge.s32.totalorder %v729, 0
          %vm731 = vcmp.lt.s32.totalorder %v729, 256
          %vm732 = vmand %vm730, %vm731
          %733 = vst.msk [vmem:[#allocation4] sm:$0x3] %vm732, %v728
          %v734 = vld [vmem:[#allocation5] sm:$0x3]
          %v735 = vmul.f32 %v683, %v683
          %v736 = vmul.f32 %v684, %v684
          %v737 = vrot.slane %v735, 4
          %v738 = vadd.f32 %v735, %v737
          %v739 = vrot.slane %v738, 2
          %v740 = vadd.f32 %v738, %v739
          %v741 = vrot.slane %v740, 1
          %v742 = vadd.f32 %v740, %v741
          %v743 = vrot.slane %v736, 4
          %v744 = vadd.f32 %v736, %v743
          %v745 = vrot.slane %v744, 2
          %v746 = vadd.f32 %v744, %v745
          %v747 = vrot.slane %v746, 1
          %v748 = vadd.f32 %v746, %v747
          %v751 = vcombine.low %v742, %v748
          %v753 = vunpack.c.l.s4 1966171168
          %v754 = vunpack.c.0.s8 %v753
          %v755 = vlaneseq
          %v756 = vshrl.u32 %v755, 7
          %v757 = vsub.s32 %v754, %v756
          %v758 = vrot.slane %v751, %v757
          %v760 = vunpack.c.l.s4 1966171168
          %v761 = vunpack.c.0.s8 %v760
          %v762 = vlaneseq
          %v763 = vshrl.u32 %v762, 7
          %v764 = vsub.s32 %v761, %v763
          %v765 = vrot.slane %v758, %v764
          %v767 = vadd.f32 %v734, %v765
          %768 = vst.msk [vmem:[#allocation5] sm:$0x3] %vm732, %v767
        $region96: #{tpu_custom_call.1} parent=71 // pred_fallthru
          _
        %p769 = scmp.eq.s32.totalorder %s34, 1
        // Predicated region
        $region101: #{tpu_custom_call.1} parent=71 // pred_check
          %p770 = pneg %p769
        $region102: #{tpu_custom_call.1} parent=71 // pred_check_branch
          %772 = sbr.rel (%p770) target = $region104
        $region103: #{tpu_custom_call.1} parent=71 // pred_region
          %p773 = scmp.eq.s32.totalorder %s35, 0
          // Predicated region
          $region105: #{tpu_custom_call.1} parent=103 // pred_check
            %p774 = pneg %p773
          $region106: #{tpu_custom_call.1} parent=103 // pred_check_branch
            %776 = sbr.rel (%p774) target = $region108
          $region107: #{tpu_custom_call.1} parent=103 // pred_region
            %777 = vst [vmem:[#allocation6] sm:$0x1] 0.0
            %778 = vst [vmem:[#allocation7] sm:$0x1] 0.0
          $region108: #{tpu_custom_call.1} parent=103 // pred_fallthru
            _
          %v779 = vld [vmem:[#allocation4] sm:$0x3]
          %v780 = vmul.f32 %v779, 0.125
          %v781 = vld [vmem:[#allocation5] sm:$0x3]
          %v782 = vmul.f32 %v781, 0.125
          %v783 = vmul.f32 %v780, %v780
          %v784 = vsub.f32 %v782, %v783
          %v785 = vmax.f32 %v784, 0.0
          %v786 = vld [vmem:[%s5] sm:$0x3]
          %v787 = vadd.f32 %v785, 1e-05
          %v788 = vrsqrt.pop %v787
          %v789 = vmul.f32 %v786, %v788
          %v790 = vld [vmem:[%s6] sm:$0x3]
          %v791 = vmul.f32 %v780, %v789
          %v792 = vsub.f32 %v790, %v791
          %s793 = smul.u32 %s35, 2
          %s794 = smul.addr %s793, 4
          %s795 = scalar_lea.vmem [#allocation2], %s794
          %v796 = vld [vmem:[%s795] sm:$0xff]
          %v797 = vunpack.c.l.bf16 %v796
          %v798 = vunpack.c.h.bf16 %v796
          %v800 = vlaneseq
          %v801 = vshrl.u32 %v800, 7
          %v802 = vsub.s32 0, %v801
          %v803 = vrot.slane %v789, %v802
          %v804 = vlaneseq
          %v805 = vshrl.u32 %v804, 7
          %v806 = vsub.s32 1, %v805
          %v807 = vrot.slane %v789, %v806
          %v810 = vmul.f32 %v797, %v803
          %v811 = vmul.f32 %v798, %v807
          %v813 = vlaneseq
          %v814 = vshrl.u32 %v813, 7
          %v815 = vsub.s32 0, %v814
          %v816 = vrot.slane %v792, %v815
          %v817 = vlaneseq
          %v818 = vshrl.u32 %v817, 7
          %v819 = vsub.s32 1, %v818
          %v820 = vrot.slane %v792, %v819
          %v823 = vadd.f32 %v810, %v816
          %v824 = vadd.f32 %v811, %v820
          %v825 = vpack.c.bf16 %v823, %v823
          %v826 = vpack.c.bf16 %v824, %v824
          %v827 = vld [vmem:[#allocation17] sm:$0xf]
          %v828 = vld [vmem:[#allocation17 + $0x4] sm:$0xf]
          %v829 = vld [vmem:[#allocation17 + $0x8] sm:$0xf]
          %v830 = vld [vmem:[#allocation17 + $0xc] sm:$0xf]
          %v831 = vld [vmem:[#allocation17 + $0x10] sm:$0xf]
          %v832 = vld [vmem:[#allocation17 + $0x14] sm:$0xf]
          %v833 = vld [vmem:[#allocation17 + $0x18] sm:$0xf]
          %v834 = vld [vmem:[#allocation17 + $0x1c] sm:$0xf]
          %v835 = vld [vmem:[#allocation17 + $0x20] sm:$0xf]
          %v836 = vld [vmem:[#allocation17 + $0x24] sm:$0xf]
          %v837 = vld [vmem:[#allocation17 + $0x28] sm:$0xf]
          %v838 = vld [vmem:[#allocation17 + $0x2c] sm:$0xf]
          %v839 = vld [vmem:[#allocation17 + $0x30] sm:$0xf]
          %v840 = vld [vmem:[#allocation17 + $0x34] sm:$0xf]
          %v841 = vld [vmem:[#allocation17 + $0x38] sm:$0xf]
          %v842 = vld [vmem:[#allocation17 + $0x3c] sm:$0xf]
          %v843 = vld [vmem:[#allocation17 + $0x40] sm:$0xf]
          %v844 = vld [vmem:[#allocation17 + $0x44] sm:$0xf]
          %v845 = vld [vmem:[#allocation17 + $0x48] sm:$0xf]
          %v846 = vld [vmem:[#allocation17 + $0x4c] sm:$0xf]
          %v847 = vld [vmem:[#allocation17 + $0x50] sm:$0xf]
          %v848 = vld [vmem:[#allocation17 + $0x54] sm:$0xf]
          %v849 = vld [vmem:[#allocation17 + $0x58] sm:$0xf]
          %v850 = vld [vmem:[#allocation17 + $0x5c] sm:$0xf]
          %v851 = vld [vmem:[#allocation17 + $0x60] sm:$0xf]
          %v852 = vld [vmem:[#allocation17 + $0x64] sm:$0xf]
          %v853 = vld [vmem:[#allocation17 + $0x68] sm:$0xf]
          %v854 = vld [vmem:[#allocation17 + $0x6c] sm:$0xf]
          %v855 = vld [vmem:[#allocation17 + $0x70] sm:$0xf]
          %v856 = vld [vmem:[#allocation17 + $0x74] sm:$0xf]
          %v857 = vld [vmem:[#allocation17 + $0x78] sm:$0xf]
          %v858 = vld [vmem:[#allocation17 + $0x7c] sm:$0xf]
          %v859 = vld [vmem:[%s8] sm:$0x1]
          %v861 = vlaneseq
          %v862 = vshrl.u32 %v861, 7
          %v863 = vsub.s32 0, %v862
          %v864 = vrot.slane %v859, %v863
          %v898 = vunpack.c.l.b16 %v827
          %v899 = vunpack.c.l.b16 %v828
          %v900 = vunpack.c.l.b16 %v829
          %v901 = vunpack.c.l.b16 %v830
          %v902 = vunpack.c.l.b16 %v831
          %v903 = vunpack.c.l.b16 %v832
          %v904 = vunpack.c.l.b16 %v833
          %v905 = vunpack.c.l.b16 %v834
          %v906 = vunpack.c.l.b16 %v835
          %v907 = vunpack.c.l.b16 %v836
          %v908 = vunpack.c.l.b16 %v837
          %v909 = vunpack.c.l.b16 %v838
          %v910 = vunpack.c.l.b16 %v839
          %v911 = vunpack.c.l.b16 %v840
          %v912 = vunpack.c.l.b16 %v841
          %v913 = vunpack.c.l.b16 %v842
          %v914 = vunpack.c.l.b16 %v843
          %v915 = vunpack.c.l.b16 %v844
          %v916 = vunpack.c.l.b16 %v845
          %v917 = vunpack.c.l.b16 %v846
          %v918 = vunpack.c.l.b16 %v847
          %v919 = vunpack.c.l.b16 %v848
          %v920 = vunpack.c.l.b16 %v849
          %v921 = vunpack.c.l.b16 %v850
          %v922 = vunpack.c.l.b16 %v851
          %v923 = vunpack.c.l.b16 %v852
          %v924 = vunpack.c.l.b16 %v853
          %v925 = vunpack.c.l.b16 %v854
          %v926 = vunpack.c.l.b16 %v855
          %v927 = vunpack.c.l.b16 %v856
          %v928 = vunpack.c.l.b16 %v857
          %v929 = vunpack.c.l.b16 %v858
          %v930 = vpack.c.b16 %v899, %v898
          %v931 = vpack.c.b16 %v901, %v900
          %v932 = vpack.c.b16 %v903, %v902
          %v933 = vpack.c.b16 %v905, %v904
          %v934 = vpack.c.b16 %v907, %v906
          %v935 = vpack.c.b16 %v909, %v908
          %v936 = vpack.c.b16 %v911, %v910
          %v937 = vpack.c.b16 %v913, %v912
          %v938 = vpack.c.b16 %v915, %v914
          %v939 = vpack.c.b16 %v917, %v916
          %v940 = vpack.c.b16 %v919, %v918
          %v941 = vpack.c.b16 %v921, %v920
          %v942 = vpack.c.b16 %v923, %v922
          %v943 = vpack.c.b16 %v925, %v924
          %v944 = vpack.c.b16 %v927, %v926
          %v945 = vpack.c.b16 %v929, %v928
          %962 = vmatprep.subr.bf16.mxu0 0
          %963 = vmatpush1.bf16.msra.mxu0 %v930
          %964 = vmatprep.subr.bf16.mxu0 0
          %965 = vmatpush1.bf16.msra.mxu0 %v931
          %966 = vmatprep.subr.bf16.mxu0 0
          %967 = vmatpush1.bf16.msra.mxu0 %v932
          %968 = vmatprep.subr.bf16.mxu0 0
          %969 = vmatpush1.bf16.msra.mxu0 %v933
          %970 = vmatprep.subr.bf16.mxu0 0
          %971 = vmatpush1.bf16.msra.mxu0 %v934
          %972 = vmatprep.subr.bf16.mxu0 0
          %973 = vmatpush1.bf16.msra.mxu0 %v935
          %974 = vmatprep.subr.bf16.mxu0 0
          %975 = vmatpush1.bf16.msra.mxu0 %v936
          %976 = vmatprep.subr.bf16.mxu0 0
          %977 = vmatpush1.bf16.msra.mxu0 %v937
          %978 = vmatprep.subr.bf16.mxu0 0
          %979 = vmatpush1.bf16.msra.mxu0 %v938
          %980 = vmatprep.subr.bf16.mxu0 0
          %981 = vmatpush1.bf16.msra.mxu0 %v939
          %982 = vmatprep.subr.bf16.mxu0 0
          %983 = vmatpush1.bf16.msra.mxu0 %v940
          %984 = vmatprep.subr.bf16.mxu0 0
          %985 = vmatpush1.bf16.msra.mxu0 %v941
          %986 = vmatprep.subr.bf16.mxu0 0
          %987 = vmatpush1.bf16.msra.mxu0 %v942
          %988 = vmatprep.subr.bf16.mxu0 0
          %989 = vmatpush1.bf16.msra.mxu0 %v943
          %990 = vmatprep.subr.bf16.mxu0 0
          %991 = vmatpush1.bf16.msra.mxu0 %v944
          %992 = vmatprep.subr.bf16.mxu0 0
          %993 = vmatpush1.bf16.msra.mxu0 %v945
          %994 = vmatprep.mubr.bf16.mxu0 %v826
          %995 = vmatmul.mubr.bf16.gmra.mrb[0].mxu0 %v825
          %v996 = vpop.f32.mrb[0].mxu0
          %v997 = vadd.f32 %v864, %v996
          %v998 = vpop.f32.mrb[0].mxu0
          %v999 = vpop.f32.mrb[0].mxu0
          %v1000 = vpop.f32.mrb[0].mxu0
          %1001 = vdwg.mxu0
          %vm1002 = vcmp.gt.f32.partialorder %v997, 0.0
          %v1003 = vmul.f32 %v997, 0.2
          %v1004 = vsel %vm1002, %v997, %v1003
          %v1005 = vpack.c.bf16 %v1004, %v1004
          %s1006 = smul.addr %s35, 4
          %s1007 = scalar_lea.vmem [#allocation3], %s1006
          %1008 = vst [vmem:[%s1007] sm:$0xf] %v1005
          %v1009 = vld [vmem:[#allocation6] sm:$0x1]
          %v1010 = vrot.slane %v1004, 4
          %v1011 = vadd.f32 %v1004, %v1010
          %v1012 = vrot.slane %v1011, 2
          %v1013 = vadd.f32 %v1011, %v1012
          %v1014 = vrot.slane %v1013, 1
          %v1015 = vadd.f32 %v1013, %v1014
          %v1016 = vadd.f32 %v1009, %v1015
          %1017 = vst [vmem:[#allocation6] sm:$0x1] %v1016
          %v1018 = vld [vmem:[#allocation7] sm:$0x1]
          %v1019 = vmul.f32 %v1004, %v1004
          %v1020 = vrot.slane %v1019, 4
          %v1021 = vadd.f32 %v1019, %v1020
          %v1022 = vrot.slane %v1021, 2
          %v1023 = vadd.f32 %v1021, %v1022
          %v1024 = vrot.slane %v1023, 1
          %v1025 = vadd.f32 %v1023, %v1024
          %v1026 = vadd.f32 %v1018, %v1025
          %1027 = vst [vmem:[#allocation7] sm:$0x1] %v1026
        $region104: #{tpu_custom_call.1} parent=71 // pred_fallthru
          _
        %p1028 = scmp.eq.s32.totalorder %s34, 2
        // Predicated region
        $region109: #{tpu_custom_call.1} parent=71 // pred_check
          %p1029 = pneg %p1028
        $region110: #{tpu_custom_call.1} parent=71 // pred_check_branch
          %1031 = sbr.rel (%p1029) target = $region112
        $region111: #{tpu_custom_call.1} parent=71 // pred_region
          %v1032 = vld [vmem:[#allocation6] sm:$0x1]
          %v1033 = vmul.f32 %v1032, 0.125
          %v1034 = vld [vmem:[#allocation7] sm:$0x1]
          %v1035 = vmul.f32 %v1034, 0.125
          %v1036 = vmul.f32 %v1033, %v1033
          %v1037 = vsub.f32 %v1035, %v1036
          %v1038 = vmax.f32 %v1037, 0.0
          %v1039 = vld [vmem:[%s9] sm:$0x1]
          %v1040 = vadd.f32 %v1038, 1e-05
          %v1041 = vrsqrt.pop %v1040
          %v1042 = vmul.f32 %v1039, %v1041
          %v1043 = vld [vmem:[%s10] sm:$0x1]
          %v1044 = vmul.f32 %v1033, %v1042
          %v1045 = vsub.f32 %v1043, %v1044
          %v1046 = vld [vmem:[%s11] sm:$0x1]
          %v1047 = vmul.f32 %v1042, %v1046
          %v1048 = vmul.f32 %v1045, %v1046
          %vm1049 = vcmask 1040384
          %v1050 = vsel %vm1049, %v1048, 0.0
          %1051 = vadd.xlane.f32.xlu0 %v1050
          %v1052 = vpop.xlane.xlu0 %1051
          %v1053 = vld [vmem:[#allocation8] sm:$0x1]
          %v1054 = vadd.f32 %v1052, %v1053
          %s1055 = smul.addr %s35, 4
          %s1056 = scalar_lea.vmem [#allocation3], %s1055
          %v1057 = vld [vmem:[%s1056] sm:$0xf]
          %v1058 = vunpack.c.l.bf16 %v1057
          %v1060 = vlaneseq
          %v1061 = vshrl.u32 %v1060, 7
          %v1062 = vsub.s32 0, %v1061
          %v1063 = vrot.slane %v1047, %v1062
          %v1065 = vmul.f32 %v1058, %v1063
          %1066 = vadd.xlane.f32.xlu0 %v1065
          %v1067 = vpop.xlane.xlu0 %1066
          %v1068 = vlaneseq
          %v1069 = vshrl.u32 %v1068, 7
          %v1070 = vsub.s32 0, %v1069
          %v1071 = vrot.slane %v1054, %v1070
          %v1072 = vadd.f32 %v1067, %v1071
          %v1073 = vxor.u32 %v1072, 2147483648
          %v1074 = vmul.f32 %v1073, 1.442695
          %v1075 = vpow.pop %v1074
          %v1076 = vadd.f32 %v1075, 1.0
          %v1077 = vrcp.pop %v1076
          %v1078 = vmul.f32 1.0, %v1077
          %1079 = vxpose.xlu0.b32.start [1/16] %v1078, 128
          %1080 = vxpose.xlu0.b32.cont [2/16] 0.0, 128
          %1081 = vxpose.xlu0.b32.cont [3/16] 0.0, 128
          %1082 = vxpose.xlu0.b32.cont [4/16] 0.0, 128
          %1083 = vxpose.xlu0.b32.cont [5/16] 0.0, 128
          %1084 = vxpose.xlu0.b32.cont [6/16] 0.0, 128
          %1085 = vxpose.xlu0.b32.cont [7/16] 0.0, 128
          %1086 = vxpose.xlu0.b32.cont [8/16] 0.0, 128
          %1087 = vxpose.xlu0.b32.cont [9/16] 0.0, 128
          %1088 = vxpose.xlu0.b32.cont [10/16] 0.0, 128
          %1089 = vxpose.xlu0.b32.cont [11/16] 0.0, 128
          %1090 = vxpose.xlu0.b32.cont [12/16] 0.0, 128
          %1091 = vxpose.xlu0.b32.cont [13/16] 0.0, 128
          %1092 = vxpose.xlu0.b32.cont [14/16] 0.0, 128
          %1093 = vxpose.xlu0.b32.cont [15/16] 0.0, 128
          %1094 = vxpose.xlu0.b32.end [16/16] 0.0, 128
          %v1095 = vpop.trf.xlu0
          %v1096 = vpop.trf.xlu0
          %v1097 = vpop.trf.xlu0
          %v1098 = vpop.trf.xlu0
          %v1099 = vpop.trf.xlu0
          %v1100 = vpop.trf.xlu0
          %v1101 = vpop.trf.xlu0
          %v1102 = vpop.trf.xlu0
          %v1103 = vpop.trf.xlu0
          %v1104 = vpop.trf.xlu0
          %v1105 = vpop.trf.xlu0
          %v1106 = vpop.trf.xlu0
          %v1107 = vpop.trf.xlu0
          %v1108 = vpop.trf.xlu0
          %v1109 = vpop.trf.xlu0
          %v1110 = vpop.trf.xlu0
          %vm1111 = vcmask 57344
          %1112 = vst.msk [vmem:[#allocation18] sm:$0x1] %vm1111, %v1095
        $region112: #{tpu_custom_call.1} parent=71 // pred_fallthru
          _
        // Predicated region
        $region113: #{tpu_custom_call.1} parent=71 // pred_check
          %p1113 = pneg %p343
        $region114: #{tpu_custom_call.1} parent=71 // pred_check_branch
          %1115 = sbr.rel (%p1113) target = $region116
        $region115: #{tpu_custom_call.1} parent=71 // pred_region
          %s1117 = ssub.s32 16, 16
          %1118 = vsyncadd [#allocation11], %s1117
          %s1119 = smul.addr %s35, 16
          %s1120 = scalar_lea.hbm %s13, %s1119
          %s1122 = sshll.u32 [#allocation18], 4
          %s1123 = int_to_ptr.vmem [resolvable:$true] %s1122
          %1125 = dma.vmem_to_hbm [thread:$0]  %s1123, 16, %s1120, [#allocation11]
        $region116: #{tpu_custom_call.1} parent=71 // pred_fallthru
          _
        // Predicated region
        $region117: #{tpu_custom_call.1} parent=71 // pred_check
          %p1126 = pneg %p343
        $region118: #{tpu_custom_call.1} parent=71 // pred_check_branch
          %1128 = sbr.rel (%p1126) target = $region120
        $region119: #{tpu_custom_call.1} parent=71 // pred_region
          %1129 = dma.done [#allocation11], 16
        $region120: #{tpu_custom_call.1} parent=71 // pred_fallthru
          _
      $region72: #{tpu_custom_call.1} parent=5 // pred_fallthru
        _
      %p1130 = scmp.le.s32.totalorder 2, %s25
      // Predicated region
      $region121: #{tpu_custom_call.1} parent=5 // pred_check
        %p1131 = pneg %p1130
      $region122: #{tpu_custom_call.1} parent=5 // pred_check_branch
        %1133 = sbr.rel (%p1131) target = $region124
      $region123: #{tpu_custom_call.1} parent=5 // pred_region
        %s1134 = ssub.s32 %s25, 2
      $region124: #{tpu_custom_call.1} parent=5 // pred_fallthru
        _
    $region6: #{tpu_custom_call.1} parent=1 // loop_footer
      %s29 = sadd.s32 1, %s25
    $region7: #{tpu_custom_call.1} parent=1 // loop_footer_branch
      %24 = sbr.rel target = $region3
    $region8: #{tpu_custom_call.1} parent=1 // loop_exit
      _
    %1135 = vsyncpa [#allocation10], 1
    %s1136 = scalar_lea.sflag [#allocation10], 1
    %1137 = vsyncpa %s1136, 1
    %1138 = vsyncpa [#allocation13], 1
    %1139 = vsyncpa [#allocation16], 1
    %1140 = vsyncpa [#allocation11], 1
    %s1141 = scalar_lea.sflag [#allocation11], 1
    %1142 = vsyncpa %s1141, 1

</llo_original>
